<compile_context>
chip_gen: v7x
topology: tpu7x:2x2x1
jax: 0.10.0
libtpu: 0.0.40
codegen_flags: <defaults>
</compile_context>

<pallas_src>
import jax
import jax.numpy as jnp
from jax.experimental import pallas as pl
from jax.experimental.pallas import tpu as pltpu  # noqa: F401  (TPU tuning hooks)

# Set to jnp.bfloat16 on v6e/v7x to feed the MXU at native rate (accumulation
# and all elementwise gate/state math stay in float32).  Keep float32 on v5e
# and for exact PyTorch numerics.
MATMUL_DTYPE = jnp.float32


# ----------------------------------------------------------------------------
# Fused kernel: [LSTM layer 0 -> LSTM layer 1 -> ... -> FC + log_softmax]
# ----------------------------------------------------------------------------
def _make_fused_kernel(S, B, I, H, O, L):
    """Builds the fused StackedLSTM forward kernel for static shapes."""

    def kernel(*refs):
        x_ref, h0_ref, c0_ref = refs[0], refs[1], refs[2]
        layer_refs = refs[3:3 + 3 * L]
        wfc_ref, bfc_ref = refs[3 + 3 * L], refs[4 + 3 * L]
        out_ref, hn_ref, cn_ref = refs[5 + 3 * L:8 + 3 * L]

        # Layer input for layer 0: the flattened (S*B, I) input sequence.
        seq_in = x_ref[...].astype(jnp.float32)

        for layer in range(L):
            wih_ref = layer_refs[3 * layer + 0]   # (in, 4H)
            whh_ref = layer_refs[3 * layer + 1]   # (H, 4H)
            b_ref = layer_refs[3 * layer + 2]     # (1, 4H) combined b_ih + b_hh

            # Hoisted input projection for ALL timesteps: one big MXU matmul.
            wih = wih_ref[...].astype(MATMUL_DTYPE)
            xg = jnp.dot(seq_in.astype(MATMUL_DTYPE), wih,
                         preferred_element_type=jnp.float32) + b_ref[...]  # (S*B, 4H)

            whh = whh_ref[...].astype(MATMUL_DTYPE)          # hoisted load/cast
            h = h0_ref[layer].astype(jnp.float32)            # (B, H)
            c = c0_ref[layer].astype(jnp.float32)            # (B, H)

            hs = []
            for t in range(S):                               # serial recurrence (unrolled)
                gates = (xg[t * B:(t + 1) * B, :]
                         + jnp.dot(h.astype(MATMUL_DTYPE), whh,
                                   preferred_element_type=jnp.float32))    # (B, 4H)
                # PyTorch gate order: i, f, g, o
                i_g = jax.nn.sigmoid(gates[:, 0:H])
                f_g = jax.nn.sigmoid(gates[:, H:2 * H])
                g_g = jnp.tanh(gates[:, 2 * H:3 * H])
                o_g = jax.nn.sigmoid(gates[:, 3 * H:4 * H])
                c = f_g * c + i_g * g_g
                h = o_g * jnp.tanh(c)
                hs.append(h)

            hn_ref[layer] = h.astype(hn_ref.dtype)
            cn_ref[layer] = c.astype(cn_ref.dtype)
            seq_in = jnp.concatenate(hs, axis=0)             # (S*B, H) -> next layer input

        # nn.Dropout() at inference time is the identity.
        # TODO(synk): training-mode dropout (p=0.5 Bernoulli mask) not implemented.

        # Per-timestep Linear + log_softmax as ONE batched matmul over (S*B, H).
        logits = jnp.dot(seq_in.astype(MATMUL_DTYPE),
                         wfc_ref[...].astype(MATMUL_DTYPE),
                         preferred_element_type=jnp.float32) + bfc_ref[...]  # (S*B, O)
        m = jnp.max(logits, axis=-1, keepdims=True)
        shifted = logits - m
        lse = jnp.log(jnp.sum(jnp.exp(shifted), axis=-1, keepdims=True))
        out_ref[...] = (shifted - lse).astype(out_ref.dtype)

    return kernel


# ----------------------------------------------------------------------------
# Wrapper
# ----------------------------------------------------------------------------
def stacked_lstm_forward(params, inputs, hidden):
    """inputs: (S, B, I); hidden = (h0, c0) each (num_layers, B, H).
    Returns (log_probs (S, B, O), (h_n, c_n))."""
    h0, c0 = hidden
    L, B, H = h0.shape
    S, _, I = inputs.shape
    O = params["fc_w_t"].shape[1]

    x2d = inputs.reshape(S * B, I)  # free row-major reshape outside the kernel

    args = [x2d, h0, c0]
    for p in params["lstm"]:
        args += [p["w_ih_t"], p["w_hh_t"], p["bias"]]
    args += [params["fc_w_t"], params["fc_b"]]

    out2d, h_n, c_n = pl.pallas_call(
        _make_fused_kernel(S, B, I, H, O, L),
        out_shape=(jax.ShapeDtypeStruct((S * B, O), inputs.dtype),
                   jax.ShapeDtypeStruct((L, B, H), inputs.dtype),
                   jax.ShapeDtypeStruct((L, B, H), inputs.dtype)),
    )(*args)

    return out2d.reshape(S, B, O), (h_n, c_n)


# ----------------------------------------------------------------------------
# Parameters (stored pre-transposed / pre-combined so the forward is transpose-free)
# ----------------------------------------------------------------------------
def init_stacked_lstm_params(key, input_size, output_size, hidden_size, num_layers):
    """PyTorch-style uniform(-k, k) init; weights stored as (in, 4H)/(H, O)."""
    params = {"lstm": []}
    k_lstm = 1.0 / jnp.sqrt(hidden_size)
    keys = jax.random.split(key, num_layers * 4 + 2)
    for layer in range(num_layers):
        in_sz = input_size if layer == 0 else hidden_size
        kw = keys[layer * 4: layer * 4 + 4]
        w_ih = jax.random.uniform(kw[0], (4 * hidden_size, in_sz), jnp.float32, -k_lstm, k_lstm)
        w_hh = jax.random.uniform(kw[1], (4 * hidden_size, hidden_size), jnp.float32, -k_lstm, k_lstm)
        b_ih = jax.random.uniform(kw[2], (4 * hidden_size,), jnp.float32, -k_lstm, k_lstm)
        b_hh = jax.random.uniform(kw[3], (4 * hidden_size,), jnp.float32, -k_lstm, k_lstm)
        params["lstm"].append({
            "w_ih_t": jnp.transpose(w_ih),                        # (in, 4H)
            "w_hh_t": jnp.transpose(w_hh),                        # (H, 4H)
            "bias": (b_ih + b_hh).reshape(1, 4 * hidden_size),    # (1, 4H)
        })
    k_fc = 1.0 / jnp.sqrt(hidden_size)
    fc_w = jax.random.uniform(keys[-2], (output_size, hidden_size), jnp.float32, -k_fc, k_fc)
    fc_b = jax.random.uniform(keys[-1], (output_size,), jnp.float32, -k_fc, k_fc)
    params["fc_w_t"] = jnp.transpose(fc_w)                        # (H, O)
    params["fc_b"] = fc_b.reshape(1, output_size)                 # (1, O)
    return params


def init_hidden(num_layers, batch_size, hidden_size, dtype=jnp.float32):
    z = jnp.zeros((num_layers, batch_size, hidden_size), dtype)
    return (z, z)


# ----------------------------------------------------------------------------
# Pure-JAX reference (same semantics, no Pallas) for correctness checking.
# ----------------------------------------------------------------------------
def _reference_forward(params, inputs, hidden):
    h0, c0 = hidden
    L = h0.shape[0]
    S, B, _ = inputs.shape
    H = h0.shape[-1]
    x = inputs
    h_n, c_n = [], []
    for layer in range(L):
        p = params["lstm"][layer]
        h, c = h0[layer], c0[layer]
        outs = []
        for t in range(S):
            gates = x[t] @ p["w_ih_t"] + h @ p["w_hh_t"] + p["bias"]
            i_g = jax.nn.sigmoid(gates[:, 0:H])
            f_g = jax.nn.sigmoid(gates[:, H:2 * H])
            g_g = jnp.tanh(gates[:, 2 * H:3 * H])
            o_g = jax.nn.sigmoid(gates[:, 3 * H:4 * H])
            c = f_g * c + i_g * g_g
            h = o_g * jnp.tanh(c)
            outs.append(h)
        x = jnp.stack(outs, axis=0)
        h_n.append(h)
        c_n.append(c)
    logits = x @ params["fc_w_t"] + params["fc_b"]
    return jax.nn.log_softmax(logits, axis=-1), (jnp.stack(h_n), jnp.stack(c_n))


if __name__ == "__main__":
    # Small shapes consistent with the module's forward.  batch is a multiple
    # of 8 (full f32 sublanes); hidden=32 so 4H = 128 = one full lane tile.
    SEQ, BATCH = 8, 8
    INPUT_SIZE, HIDDEN_SIZE, OUTPUT_SIZE, NUM_LAYERS = 16, 32, 11, 2

    key = jax.random.PRNGKey(0)
    k_param, k_x = jax.random.split(key)

    params = init_stacked_lstm_params(k_param, INPUT_SIZE, OUTPUT_SIZE,
                                      HIDDEN_SIZE, NUM_LAYERS)
    x = jax.random.normal(k_x, (SEQ, BATCH, INPUT_SIZE), jnp.float32)
    hidden = init_hidden(NUM_LAYERS, BATCH, HIDDEN_SIZE)

    fwd = jax.jit(stacked_lstm_forward)
    out, (h_n, c_n) = fwd(params, x, hidden)
    jax.block_until_ready((out, h_n, c_n))

    assert out.shape == (SEQ, BATCH, OUTPUT_SIZE)
    assert h_n.shape == (NUM_LAYERS, BATCH, HIDDEN_SIZE)
    assert c_n.shape == (NUM_LAYERS, BATCH, HIDDEN_SIZE)
    # log_softmax rows should sum to 1 in prob space.
    assert jnp.allclose(jnp.sum(jnp.exp(out), axis=-1), 1.0, atol=1e-4)

    # Cross-check against the pure-JAX reference implementation.
    ref_out, (ref_h, ref_c) = _reference_forward(params, x, hidden)
    assert jnp.allclose(out, ref_out, atol=1e-4, rtol=1e-4)
    assert jnp.allclose(h_n, ref_h, atol=1e-4, rtol=1e-4)
    assert jnp.allclose(c_n, ref_c, atol=1e-4, rtol=1e-4)

    print("KERNEL_OK")
</pallas_src>

<mosaic_0001>
module attributes {stable_mosaic.version = 11 : i64} {
  func.func @kernel(%arg0: memref<64x16xf32, #tpu.memory_space<vmem>>, %arg1: memref<2x8x32xf32, #tpu.memory_space<vmem>>, %arg2: memref<2x8x32xf32, #tpu.memory_space<vmem>>, %arg3: memref<16x128xf32, #tpu.memory_space<vmem>>, %arg4: memref<32x128xf32, #tpu.memory_space<vmem>>, %arg5: memref<1x128xf32, #tpu.memory_space<vmem>>, %arg6: memref<32x128xf32, #tpu.memory_space<vmem>>, %arg7: memref<32x128xf32, #tpu.memory_space<vmem>>, %arg8: memref<1x128xf32, #tpu.memory_space<vmem>>, %arg9: memref<32x11xf32, #tpu.memory_space<vmem>>, %arg10: memref<1x11xf32, #tpu.memory_space<vmem>>, %arg11: memref<64x11xf32, #tpu.memory_space<vmem>>, %arg12: memref<2x8x32xf32, #tpu.memory_space<vmem>>, %arg13: memref<2x8x32xf32, #tpu.memory_space<vmem>>) attributes {dimension_semantics = [], scalar_prefetch = 0 : i64, scratch_operands = 0 : i64, tpu.core_type = #tpu.core_type<tc>} {
    %c0 = arith.constant 0 : index
    %c0_0 = arith.constant 0 : index
    %0 = vector.load %arg0[%c0, %c0_0] : memref<64x16xf32, #tpu.memory_space<vmem>>, vector<64x16xf32>
    %c0_1 = arith.constant 0 : index
    %c0_2 = arith.constant 0 : index
    %1 = vector.load %arg3[%c0_1, %c0_2] : memref<16x128xf32, #tpu.memory_space<vmem>>, vector<16x128xf32>
    %cst = arith.constant dense<0.000000e+00> : vector<64x128xf32>
    %2 = tpu.matmul %0, %1, %cst {dimension_numbers = #tpu.dot_dimension_numbers<[1], [0], [0], [1], [0, 0, 1, 1], [], []>} : vector<64x16xf32>, vector<16x128xf32>, vector<64x128xf32> -> vector<64x128xf32>
    %c0_3 = arith.constant 0 : index
    %c0_4 = arith.constant 0 : index
    %3 = vector.load %arg5[%c0_3, %c0_4] : memref<1x128xf32, #tpu.memory_space<vmem>>, vector<1x128xf32>
    %4 = vector.broadcast %3 : vector<1x128xf32> to vector<64x128xf32>
    %5 = arith.addf %2, %4 : vector<64x128xf32>
    %c0_5 = arith.constant 0 : index
    %c0_6 = arith.constant 0 : index
    %6 = vector.load %arg4[%c0_5, %c0_6] : memref<32x128xf32, #tpu.memory_space<vmem>>, vector<32x128xf32>
    %c0_7 = arith.constant 0 : index
    %c0_8 = arith.constant 0 : index
    %c0_9 = arith.constant 0 : index
    %7 = vector.load %arg1[%c0_7, %c0_8, %c0_9] : memref<2x8x32xf32, #tpu.memory_space<vmem>>, vector<1x8x32xf32>
    %8 = vector.shape_cast %7 : vector<1x8x32xf32> to vector<8x32xf32>
    %c0_10 = arith.constant 0 : index
    %c0_11 = arith.constant 0 : index
    %c0_12 = arith.constant 0 : index
    %9 = vector.load %arg2[%c0_10, %c0_11, %c0_12] : memref<2x8x32xf32, #tpu.memory_space<vmem>>, vector<1x8x32xf32>
    %10 = vector.shape_cast %9 : vector<1x8x32xf32> to vector<8x32xf32>
    %11 = vector.extract_strided_slice %5 {offsets = [0, 0], sizes = [8, 128], strides = [1, 1]} : vector<64x128xf32> to vector<8x128xf32>
    %cst_13 = arith.constant dense<0.000000e+00> : vector<8x128xf32>
    %12 = tpu.matmul %8, %6, %cst_13 {dimension_numbers = #tpu.dot_dimension_numbers<[1], [0], [0], [1], [0, 0, 1, 1], [], []>} : vector<8x32xf32>, vector<32x128xf32>, vector<8x128xf32> -> vector<8x128xf32>
    %13 = arith.addf %11, %12 : vector<8x128xf32>
    %14 = vector.extract_strided_slice %13 {offsets = [0, 0], sizes = [8, 32], strides = [1, 1]} : vector<8x128xf32> to vector<8x32xf32>
    %15 = arith.negf %14 : vector<8x32xf32>
    %16 = math.exp %15 : vector<8x32xf32>
    %cst_14 = arith.constant 1.000000e+00 : f32
    %17 = vector.broadcast %cst_14 : f32 to vector<8x32xf32>
    %18 = arith.addf %17, %16 : vector<8x32xf32>
    %19 = arith.divf %17, %18 : vector<8x32xf32>
    %20 = vector.extract_strided_slice %13 {offsets = [0, 32], sizes = [8, 32], strides = [1, 1]} : vector<8x128xf32> to vector<8x32xf32>
    %21 = arith.negf %20 : vector<8x32xf32>
    %22 = math.exp %21 : vector<8x32xf32>
    %cst_15 = arith.constant 1.000000e+00 : f32
    %23 = vector.broadcast %cst_15 : f32 to vector<8x32xf32>
    %24 = arith.addf %23, %22 : vector<8x32xf32>
    %25 = arith.divf %23, %24 : vector<8x32xf32>
    %26 = vector.extract_strided_slice %13 {offsets = [0, 64], sizes = [8, 32], strides = [1, 1]} : vector<8x128xf32> to vector<8x32xf32>
    %27 = math.tanh %26 : vector<8x32xf32>
    %28 = vector.extract_strided_slice %13 {offsets = [0, 96], sizes = [8, 32], strides = [1, 1]} : vector<8x128xf32> to vector<8x32xf32>
    %29 = arith.negf %28 : vector<8x32xf32>
    %30 = math.exp %29 : vector<8x32xf32>
    %cst_16 = arith.constant 1.000000e+00 : f32
    %31 = vector.broadcast %cst_16 : f32 to vector<8x32xf32>
    %32 = arith.addf %31, %30 : vector<8x32xf32>
    %33 = arith.divf %31, %32 : vector<8x32xf32>
    %34 = arith.mulf %25, %10 : vector<8x32xf32>
    %35 = arith.mulf %19, %27 : vector<8x32xf32>
    %36 = arith.addf %34, %35 : vector<8x32xf32>
    %37 = math.tanh %36 : vector<8x32xf32>
    %38 = arith.mulf %33, %37 : vector<8x32xf32>
    %39 = vector.extract_strided_slice %5 {offsets = [8, 0], sizes = [8, 128], strides = [1, 1]} : vector<64x128xf32> to vector<8x128xf32>
    %cst_17 = arith.constant dense<0.000000e+00> : vector<8x128xf32>
    %40 = tpu.matmul %38, %6, %cst_17 {dimension_numbers = #tpu.dot_dimension_numbers<[1], [0], [0], [1], [0, 0, 1, 1], [], []>} : vector<8x32xf32>, vector<32x128xf32>, vector<8x128xf32> -> vector<8x128xf32>
    %41 = arith.addf %39, %40 : vector<8x128xf32>
    %42 = vector.extract_strided_slice %41 {offsets = [0, 0], sizes = [8, 32], strides = [1, 1]} : vector<8x128xf32> to vector<8x32xf32>
    %43 = arith.negf %42 : vector<8x32xf32>
    %44 = math.exp %43 : vector<8x32xf32>
    %cst_18 = arith.constant 1.000000e+00 : f32
    %45 = vector.broadcast %cst_18 : f32 to vector<8x32xf32>
    %46 = arith.addf %45, %44 : vector<8x32xf32>
    %47 = arith.divf %45, %46 : vector<8x32xf32>
    %48 = vector.extract_strided_slice %41 {offsets = [0, 32], sizes = [8, 32], strides = [1, 1]} : vector<8x128xf32> to vector<8x32xf32>
    %49 = arith.negf %48 : vector<8x32xf32>
    %50 = math.exp %49 : vector<8x32xf32>
    %cst_19 = arith.constant 1.000000e+00 : f32
    %51 = vector.broadcast %cst_19 : f32 to vector<8x32xf32>
    %52 = arith.addf %51, %50 : vector<8x32xf32>
    %53 = arith.divf %51, %52 : vector<8x32xf32>
    %54 = vector.extract_strided_slice %41 {offsets = [0, 64], sizes = [8, 32], strides = [1, 1]} : vector<8x128xf32> to vector<8x32xf32>
    %55 = math.tanh %54 : vector<8x32xf32>
    %56 = vector.extract_strided_slice %41 {offsets = [0, 96], sizes = [8, 32], strides = [1, 1]} : vector<8x128xf32> to vector<8x32xf32>
    %57 = arith.negf %56 : vector<8x32xf32>
    %58 = math.exp %57 : vector<8x32xf32>
    %cst_20 = arith.constant 1.000000e+00 : f32
    %59 = vector.broadcast %cst_20 : f32 to vector<8x32xf32>
    %60 = arith.addf %59, %58 : vector<8x32xf32>
    %61 = arith.divf %59, %60 : vector<8x32xf32>
    %62 = arith.mulf %53, %36 : vector<8x32xf32>
    %63 = arith.mulf %47, %55 : vector<8x32xf32>
    %64 = arith.addf %62, %63 : vector<8x32xf32>
    %65 = math.tanh %64 : vector<8x32xf32>
    %66 = arith.mulf %61, %65 : vector<8x32xf32>
    %67 = vector.extract_strided_slice %5 {offsets = [16, 0], sizes = [8, 128], strides = [1, 1]} : vector<64x128xf32> to vector<8x128xf32>
    %cst_21 = arith.constant dense<0.000000e+00> : vector<8x128xf32>
    %68 = tpu.matmul %66, %6, %cst_21 {dimension_numbers = #tpu.dot_dimension_numbers<[1], [0], [0], [1], [0, 0, 1, 1], [], []>} : vector<8x32xf32>, vector<32x128xf32>, vector<8x128xf32> -> vector<8x128xf32>
    %69 = arith.addf %67, %68 : vector<8x128xf32>
    %70 = vector.extract_strided_slice %69 {offsets = [0, 0], sizes = [8, 32], strides = [1, 1]} : vector<8x128xf32> to vector<8x32xf32>
    %71 = arith.negf %70 : vector<8x32xf32>
    %72 = math.exp %71 : vector<8x32xf32>
    %cst_22 = arith.constant 1.000000e+00 : f32
    %73 = vector.broadcast %cst_22 : f32 to vector<8x32xf32>
    %74 = arith.addf %73, %72 : vector<8x32xf32>
    %75 = arith.divf %73, %74 : vector<8x32xf32>
    %76 = vector.extract_strided_slice %69 {offsets = [0, 32], sizes = [8, 32], strides = [1, 1]} : vector<8x128xf32> to vector<8x32xf32>
    %77 = arith.negf %76 : vector<8x32xf32>
    %78 = math.exp %77 : vector<8x32xf32>
    %cst_23 = arith.constant 1.000000e+00 : f32
    %79 = vector.broadcast %cst_23 : f32 to vector<8x32xf32>
    %80 = arith.addf %79, %78 : vector<8x32xf32>
    %81 = arith.divf %79, %80 : vector<8x32xf32>
    %82 = vector.extract_strided_slice %69 {offsets = [0, 64], sizes = [8, 32], strides = [1, 1]} : vector<8x128xf32> to vector<8x32xf32>
    %83 = math.tanh %82 : vector<8x32xf32>
    %84 = vector.extract_strided_slice %69 {offsets = [0, 96], sizes = [8, 32], strides = [1, 1]} : vector<8x128xf32> to vector<8x32xf32>
    %85 = arith.negf %84 : vector<8x32xf32>
    %86 = math.exp %85 : vector<8x32xf32>
    %cst_24 = arith.constant 1.000000e+00 : f32
    %87 = vector.broadcast %cst_24 : f32 to vector<8x32xf32>
    %88 = arith.addf %87, %86 : vector<8x32xf32>
    %89 = arith.divf %87, %88 : vector<8x32xf32>
    %90 = arith.mulf %81, %64 : vector<8x32xf32>
    %91 = arith.mulf %75, %83 : vector<8x32xf32>
    %92 = arith.addf %90, %91 : vector<8x32xf32>
    %93 = math.tanh %92 : vector<8x32xf32>
    %94 = arith.mulf %89, %93 : vector<8x32xf32>
    %95 = vector.extract_strided_slice %5 {offsets = [24, 0], sizes = [8, 128], strides = [1, 1]} : vector<64x128xf32> to vector<8x128xf32>
    %cst_25 = arith.constant dense<0.000000e+00> : vector<8x128xf32>
    %96 = tpu.matmul %94, %6, %cst_25 {dimension_numbers = #tpu.dot_dimension_numbers<[1], [0], [0], [1], [0, 0, 1, 1], [], []>} : vector<8x32xf32>, vector<32x128xf32>, vector<8x128xf32> -> vector<8x128xf32>
    %97 = arith.addf %95, %96 : vector<8x128xf32>
    %98 = vector.extract_strided_slice %97 {offsets = [0, 0], sizes = [8, 32], strides = [1, 1]} : vector<8x128xf32> to vector<8x32xf32>
    %99 = arith.negf %98 : vector<8x32xf32>
    %100 = math.exp %99 : vector<8x32xf32>
    %cst_26 = arith.constant 1.000000e+00 : f32
    %101 = vector.broadcast %cst_26 : f32 to vector<8x32xf32>
    %102 = arith.addf %101, %100 : vector<8x32xf32>
    %103 = arith.divf %101, %102 : vector<8x32xf32>
    %104 = vector.extract_strided_slice %97 {offsets = [0, 32], sizes = [8, 32], strides = [1, 1]} : vector<8x128xf32> to vector<8x32xf32>
    %105 = arith.negf %104 : vector<8x32xf32>
    %106 = math.exp %105 : vector<8x32xf32>
    %cst_27 = arith.constant 1.000000e+00 : f32
    %107 = vector.broadcast %cst_27 : f32 to vector<8x32xf32>
    %108 = arith.addf %107, %106 : vector<8x32xf32>
    %109 = arith.divf %107, %108 : vector<8x32xf32>
    %110 = vector.extract_strided_slice %97 {offsets = [0, 64], sizes = [8, 32], strides = [1, 1]} : vector<8x128xf32> to vector<8x32xf32>
    %111 = math.tanh %110 : vector<8x32xf32>
    %112 = vector.extract_strided_slice %97 {offsets = [0, 96], sizes = [8, 32], strides = [1, 1]} : vector<8x128xf32> to vector<8x32xf32>
    %113 = arith.negf %112 : vector<8x32xf32>
    %114 = math.exp %113 : vector<8x32xf32>
    %cst_28 = arith.constant 1.000000e+00 : f32
    %115 = vector.broadcast %cst_28 : f32 to vector<8x32xf32>
    %116 = arith.addf %115, %114 : vector<8x32xf32>
    %117 = arith.divf %115, %116 : vector<8x32xf32>
    %118 = arith.mulf %109, %92 : vector<8x32xf32>
    %119 = arith.mulf %103, %111 : vector<8x32xf32>
    %120 = arith.addf %118, %119 : vector<8x32xf32>
    %121 = math.tanh %120 : vector<8x32xf32>
    %122 = arith.mulf %117, %121 : vector<8x32xf32>
    %123 = vector.extract_strided_slice %5 {offsets = [32, 0], sizes = [8, 128], strides = [1, 1]} : vector<64x128xf32> to vector<8x128xf32>
    %cst_29 = arith.constant dense<0.000000e+00> : vector<8x128xf32>
    %124 = tpu.matmul %122, %6, %cst_29 {dimension_numbers = #tpu.dot_dimension_numbers<[1], [0], [0], [1], [0, 0, 1, 1], [], []>} : vector<8x32xf32>, vector<32x128xf32>, vector<8x128xf32> -> vector<8x128xf32>
    %125 = arith.addf %123, %124 : vector<8x128xf32>
    %126 = vector.extract_strided_slice %125 {offsets = [0, 0], sizes = [8, 32], strides = [1, 1]} : vector<8x128xf32> to vector<8x32xf32>
    %127 = arith.negf %126 : vector<8x32xf32>
    %128 = math.exp %127 : vector<8x32xf32>
    %cst_30 = arith.constant 1.000000e+00 : f32
    %129 = vector.broadcast %cst_30 : f32 to vector<8x32xf32>
    %130 = arith.addf %129, %128 : vector<8x32xf32>
    %131 = arith.divf %129, %130 : vector<8x32xf32>
    %132 = vector.extract_strided_slice %125 {offsets = [0, 32], sizes = [8, 32], strides = [1, 1]} : vector<8x128xf32> to vector<8x32xf32>
    %133 = arith.negf %132 : vector<8x32xf32>
    %134 = math.exp %133 : vector<8x32xf32>
    %cst_31 = arith.constant 1.000000e+00 : f32
    %135 = vector.broadcast %cst_31 : f32 to vector<8x32xf32>
    %136 = arith.addf %135, %134 : vector<8x32xf32>
    %137 = arith.divf %135, %136 : vector<8x32xf32>
    %138 = vector.extract_strided_slice %125 {offsets = [0, 64], sizes = [8, 32], strides = [1, 1]} : vector<8x128xf32> to vector<8x32xf32>
    %139 = math.tanh %138 : vector<8x32xf32>
    %140 = vector.extract_strided_slice %125 {offsets = [0, 96], sizes = [8, 32], strides = [1, 1]} : vector<8x128xf32> to vector<8x32xf32>
    %141 = arith.negf %140 : vector<8x32xf32>
    %142 = math.exp %141 : vector<8x32xf32>
    %cst_32 = arith.constant 1.000000e+00 : f32
    %143 = vector.broadcast %cst_32 : f32 to vector<8x32xf32>
    %144 = arith.addf %143, %142 : vector<8x32xf32>
    %145 = arith.divf %143, %144 : vector<8x32xf32>
    %146 = arith.mulf %137, %120 : vector<8x32xf32>
    %147 = arith.mulf %131, %139 : vector<8x32xf32>
    %148 = arith.addf %146, %147 : vector<8x32xf32>
    %149 = math.tanh %148 : vector<8x32xf32>
    %150 = arith.mulf %145, %149 : vector<8x32xf32>
    %151 = vector.extract_strided_slice %5 {offsets = [40, 0], sizes = [8, 128], strides = [1, 1]} : vector<64x128xf32> to vector<8x128xf32>
    %cst_33 = arith.constant dense<0.000000e+00> : vector<8x128xf32>
    %152 = tpu.matmul %150, %6, %cst_33 {dimension_numbers = #tpu.dot_dimension_numbers<[1], [0], [0], [1], [0, 0, 1, 1], [], []>} : vector<8x32xf32>, vector<32x128xf32>, vector<8x128xf32> -> vector<8x128xf32>
    %153 = arith.addf %151, %152 : vector<8x128xf32>
    %154 = vector.extract_strided_slice %153 {offsets = [0, 0], sizes = [8, 32], strides = [1, 1]} : vector<8x128xf32> to vector<8x32xf32>
    %155 = arith.negf %154 : vector<8x32xf32>
    %156 = math.exp %155 : vector<8x32xf32>
    %cst_34 = arith.constant 1.000000e+00 : f32
    %157 = vector.broadcast %cst_34 : f32 to vector<8x32xf32>
    %158 = arith.addf %157, %156 : vector<8x32xf32>
    %159 = arith.divf %157, %158 : vector<8x32xf32>
    %160 = vector.extract_strided_slice %153 {offsets = [0, 32], sizes = [8, 32], strides = [1, 1]} : vector<8x128xf32> to vector<8x32xf32>
    %161 = arith.negf %160 : vector<8x32xf32>
    %162 = math.exp %161 : vector<8x32xf32>
    %cst_35 = arith.constant 1.000000e+00 : f32
    %163 = vector.broadcast %cst_35 : f32 to vector<8x32xf32>
    %164 = arith.addf %163, %162 : vector<8x32xf32>
    %165 = arith.divf %163, %164 : vector<8x32xf32>
    %166 = vector.extract_strided_slice %153 {offsets = [0, 64], sizes = [8, 32], strides = [1, 1]} : vector<8x128xf32> to vector<8x32xf32>
    %167 = math.tanh %166 : vector<8x32xf32>
    %168 = vector.extract_strided_slice %153 {offsets = [0, 96], sizes = [8, 32], strides = [1, 1]} : vector<8x128xf32> to vector<8x32xf32>
    %169 = arith.negf %168 : vector<8x32xf32>
    %170 = math.exp %169 : vector<8x32xf32>
    %cst_36 = arith.constant 1.000000e+00 : f32
    %171 = vector.broadcast %cst_36 : f32 to vector<8x32xf32>
    %172 = arith.addf %171, %170 : vector<8x32xf32>
    %173 = arith.divf %171, %172 : vector<8x32xf32>
    %174 = arith.mulf %165, %148 : vector<8x32xf32>
    %175 = arith.mulf %159, %167 : vector<8x32xf32>
    %176 = arith.addf %174, %175 : vector<8x32xf32>
    %177 = math.tanh %176 : vector<8x32xf32>
    %178 = arith.mulf %173, %177 : vector<8x32xf32>
    %179 = vector.extract_strided_slice %5 {offsets = [48, 0], sizes = [8, 128], strides = [1, 1]} : vector<64x128xf32> to vector<8x128xf32>
    %cst_37 = arith.constant dense<0.000000e+00> : vector<8x128xf32>
    %180 = tpu.matmul %178, %6, %cst_37 {dimension_numbers = #tpu.dot_dimension_numbers<[1], [0], [0], [1], [0, 0, 1, 1], [], []>} : vector<8x32xf32>, vector<32x128xf32>, vector<8x128xf32> -> vector<8x128xf32>
    %181 = arith.addf %179, %180 : vector<8x128xf32>
    %182 = vector.extract_strided_slice %181 {offsets = [0, 0], sizes = [8, 32], strides = [1, 1]} : vector<8x128xf32> to vector<8x32xf32>
    %183 = arith.negf %182 : vector<8x32xf32>
    %184 = math.exp %183 : vector<8x32xf32>
    %cst_38 = arith.constant 1.000000e+00 : f32
    %185 = vector.broadcast %cst_38 : f32 to vector<8x32xf32>
    %186 = arith.addf %185, %184 : vector<8x32xf32>
    %187 = arith.divf %185, %186 : vector<8x32xf32>
    %188 = vector.extract_strided_slice %181 {offsets = [0, 32], sizes = [8, 32], strides = [1, 1]} : vector<8x128xf32> to vector<8x32xf32>
    %189 = arith.negf %188 : vector<8x32xf32>
    %190 = math.exp %189 : vector<8x32xf32>
    %cst_39 = arith.constant 1.000000e+00 : f32
    %191 = vector.broadcast %cst_39 : f32 to vector<8x32xf32>
    %192 = arith.addf %191, %190 : vector<8x32xf32>
    %193 = arith.divf %191, %192 : vector<8x32xf32>
    %194 = vector.extract_strided_slice %181 {offsets = [0, 64], sizes = [8, 32], strides = [1, 1]} : vector<8x128xf32> to vector<8x32xf32>
    %195 = math.tanh %194 : vector<8x32xf32>
    %196 = vector.extract_strided_slice %181 {offsets = [0, 96], sizes = [8, 32], strides = [1, 1]} : vector<8x128xf32> to vector<8x32xf32>
    %197 = arith.negf %196 : vector<8x32xf32>
    %198 = math.exp %197 : vector<8x32xf32>
    %cst_40 = arith.constant 1.000000e+00 : f32
    %199 = vector.broadcast %cst_40 : f32 to vector<8x32xf32>
    %200 = arith.addf %199, %198 : vector<8x32xf32>
    %201 = arith.divf %199, %200 : vector<8x32xf32>
    %202 = arith.mulf %193, %176 : vector<8x32xf32>
    %203 = arith.mulf %187, %195 : vector<8x32xf32>
    %204 = arith.addf %202, %203 : vector<8x32xf32>
    %205 = math.tanh %204 : vector<8x32xf32>
    %206 = arith.mulf %201, %205 : vector<8x32xf32>
    %207 = vector.extract_strided_slice %5 {offsets = [56, 0], sizes = [8, 128], strides = [1, 1]} : vector<64x128xf32> to vector<8x128xf32>
    %cst_41 = arith.constant dense<0.000000e+00> : vector<8x128xf32>
    %208 = tpu.matmul %206, %6, %cst_41 {dimension_numbers = #tpu.dot_dimension_numbers<[1], [0], [0], [1], [0, 0, 1, 1], [], []>} : vector<8x32xf32>, vector<32x128xf32>, vector<8x128xf32> -> vector<8x128xf32>
    %209 = arith.addf %207, %208 : vector<8x128xf32>
    %210 = vector.extract_strided_slice %209 {offsets = [0, 0], sizes = [8, 32], strides = [1, 1]} : vector<8x128xf32> to vector<8x32xf32>
    %211 = arith.negf %210 : vector<8x32xf32>
    %212 = math.exp %211 : vector<8x32xf32>
    %cst_42 = arith.constant 1.000000e+00 : f32
    %213 = vector.broadcast %cst_42 : f32 to vector<8x32xf32>
    %214 = arith.addf %213, %212 : vector<8x32xf32>
    %215 = arith.divf %213, %214 : vector<8x32xf32>
    %216 = vector.extract_strided_slice %209 {offsets = [0, 32], sizes = [8, 32], strides = [1, 1]} : vector<8x128xf32> to vector<8x32xf32>
    %217 = arith.negf %216 : vector<8x32xf32>
    %218 = math.exp %217 : vector<8x32xf32>
    %cst_43 = arith.constant 1.000000e+00 : f32
    %219 = vector.broadcast %cst_43 : f32 to vector<8x32xf32>
    %220 = arith.addf %219, %218 : vector<8x32xf32>
    %221 = arith.divf %219, %220 : vector<8x32xf32>
    %222 = vector.extract_strided_slice %209 {offsets = [0, 64], sizes = [8, 32], strides = [1, 1]} : vector<8x128xf32> to vector<8x32xf32>
    %223 = math.tanh %222 : vector<8x32xf32>
    %224 = vector.extract_strided_slice %209 {offsets = [0, 96], sizes = [8, 32], strides = [1, 1]} : vector<8x128xf32> to vector<8x32xf32>
    %225 = arith.negf %224 : vector<8x32xf32>
    %226 = math.exp %225 : vector<8x32xf32>
    %cst_44 = arith.constant 1.000000e+00 : f32
    %227 = vector.broadcast %cst_44 : f32 to vector<8x32xf32>
    %228 = arith.addf %227, %226 : vector<8x32xf32>
    %229 = arith.divf %227, %228 : vector<8x32xf32>
    %230 = arith.mulf %221, %204 : vector<8x32xf32>
    %231 = arith.mulf %215, %223 : vector<8x32xf32>
    %232 = arith.addf %230, %231 : vector<8x32xf32>
    %233 = math.tanh %232 : vector<8x32xf32>
    %234 = arith.mulf %229, %233 : vector<8x32xf32>
    %c0_45 = arith.constant 0 : index
    %c0_46 = arith.constant 0 : index
    %c0_47 = arith.constant 0 : index
    %235 = vector.load %arg12[%c0_45, %c0_46, %c0_47] : memref<2x8x32xf32, #tpu.memory_space<vmem>>, vector<1x8x32xf32>
    %236 = vector.shape_cast %235 : vector<1x8x32xf32> to vector<8x32xf32>
    %237 = vector.shape_cast %234 : vector<8x32xf32> to vector<1x8x32xf32>
    tpu.vector_store %arg12[%c0_45, %c0_46, %c0_47], %237 {strides = array<i32>} : memref<2x8x32xf32, #tpu.memory_space<vmem>>, vector<1x8x32xf32>,
    %c0_48 = arith.constant 0 : index
    %c0_49 = arith.constant 0 : index
    %c0_50 = arith.constant 0 : index
    %238 = vector.load %arg13[%c0_48, %c0_49, %c0_50] : memref<2x8x32xf32, #tpu.memory_space<vmem>>, vector<1x8x32xf32>
    %239 = vector.shape_cast %238 : vector<1x8x32xf32> to vector<8x32xf32>
    %240 = vector.shape_cast %232 : vector<8x32xf32> to vector<1x8x32xf32>
    tpu.vector_store %arg13[%c0_48, %c0_49, %c0_50], %240 {strides = array<i32>} : memref<2x8x32xf32, #tpu.memory_space<vmem>>, vector<1x8x32xf32>,
    %241 = tpu.concatenate %38, %66, %94, %122, %150, %178, %206, %234 in 0 : vector<8x32xf32>, vector<8x32xf32>, vector<8x32xf32>, vector<8x32xf32>, vector<8x32xf32>, vector<8x32xf32>, vector<8x32xf32>, vector<8x32xf32> -> vector<64x32xf32>
    %c0_51 = arith.constant 0 : index
    %c0_52 = arith.constant 0 : index
    %242 = vector.load %arg6[%c0_51, %c0_52] : memref<32x128xf32, #tpu.memory_space<vmem>>, vector<32x128xf32>
    %cst_53 = arith.constant dense<0.000000e+00> : vector<64x128xf32>
    %243 = tpu.matmul %241, %242, %cst_53 {dimension_numbers = #tpu.dot_dimension_numbers<[1], [0], [0], [1], [0, 0, 1, 1], [], []>} : vector<64x32xf32>, vector<32x128xf32>, vector<64x128xf32> -> vector<64x128xf32>
    %c0_54 = arith.constant 0 : index
    %c0_55 = arith.constant 0 : index
    %244 = vector.load %arg8[%c0_54, %c0_55] : memref<1x128xf32, #tpu.memory_space<vmem>>, vector<1x128xf32>
    %245 = vector.broadcast %244 : vector<1x128xf32> to vector<64x128xf32>
    %246 = arith.addf %243, %245 : vector<64x128xf32>
    %c0_56 = arith.constant 0 : index
    %c0_57 = arith.constant 0 : index
    %247 = vector.load %arg7[%c0_56, %c0_57] : memref<32x128xf32, #tpu.memory_space<vmem>>, vector<32x128xf32>
    %c1 = arith.constant 1 : index
    %c0_58 = arith.constant 0 : index
    %c0_59 = arith.constant 0 : index
    %248 = vector.load %arg1[%c1, %c0_58, %c0_59] : memref<2x8x32xf32, #tpu.memory_space<vmem>>, vector<1x8x32xf32>
    %249 = vector.shape_cast %248 : vector<1x8x32xf32> to vector<8x32xf32>
    %c1_60 = arith.constant 1 : index
    %c0_61 = arith.constant 0 : index
    %c0_62 = arith.constant 0 : index
    %250 = vector.load %arg2[%c1_60, %c0_61, %c0_62] : memref<2x8x32xf32, #tpu.memory_space<vmem>>, vector<1x8x32xf32>
    %251 = vector.shape_cast %250 : vector<1x8x32xf32> to vector<8x32xf32>
    %252 = vector.extract_strided_slice %246 {offsets = [0, 0], sizes = [8, 128], strides = [1, 1]} : vector<64x128xf32> to vector<8x128xf32>
    %cst_63 = arith.constant dense<0.000000e+00> : vector<8x128xf32>
    %253 = tpu.matmul %249, %247, %cst_63 {dimension_numbers = #tpu.dot_dimension_numbers<[1], [0], [0], [1], [0, 0, 1, 1], [], []>} : vector<8x32xf32>, vector<32x128xf32>, vector<8x128xf32> -> vector<8x128xf32>
    %254 = arith.addf %252, %253 : vector<8x128xf32>
    %255 = vector.extract_strided_slice %254 {offsets = [0, 0], sizes = [8, 32], strides = [1, 1]} : vector<8x128xf32> to vector<8x32xf32>
    %256 = arith.negf %255 : vector<8x32xf32>
    %257 = math.exp %256 : vector<8x32xf32>
    %cst_64 = arith.constant 1.000000e+00 : f32
    %258 = vector.broadcast %cst_64 : f32 to vector<8x32xf32>
    %259 = arith.addf %258, %257 : vector<8x32xf32>
    %260 = arith.divf %258, %259 : vector<8x32xf32>
    %261 = vector.extract_strided_slice %254 {offsets = [0, 32], sizes = [8, 32], strides = [1, 1]} : vector<8x128xf32> to vector<8x32xf32>
    %262 = arith.negf %261 : vector<8x32xf32>
    %263 = math.exp %262 : vector<8x32xf32>
    %cst_65 = arith.constant 1.000000e+00 : f32
    %264 = vector.broadcast %cst_65 : f32 to vector<8x32xf32>
    %265 = arith.addf %264, %263 : vector<8x32xf32>
    %266 = arith.divf %264, %265 : vector<8x32xf32>
    %267 = vector.extract_strided_slice %254 {offsets = [0, 64], sizes = [8, 32], strides = [1, 1]} : vector<8x128xf32> to vector<8x32xf32>
    %268 = math.tanh %267 : vector<8x32xf32>
    %269 = vector.extract_strided_slice %254 {offsets = [0, 96], sizes = [8, 32], strides = [1, 1]} : vector<8x128xf32> to vector<8x32xf32>
    %270 = arith.negf %269 : vector<8x32xf32>
    %271 = math.exp %270 : vector<8x32xf32>
    %cst_66 = arith.constant 1.000000e+00 : f32
    %272 = vector.broadcast %cst_66 : f32 to vector<8x32xf32>
    %273 = arith.addf %272, %271 : vector<8x32xf32>
    %274 = arith.divf %272, %273 : vector<8x32xf32>
    %275 = arith.mulf %266, %251 : vector<8x32xf32>
    %276 = arith.mulf %260, %268 : vector<8x32xf32>
    %277 = arith.addf %275, %276 : vector<8x32xf32>
    %278 = math.tanh %277 : vector<8x32xf32>
    %279 = arith.mulf %274, %278 : vector<8x32xf32>
    %280 = vector.extract_strided_slice %246 {offsets = [8, 0], sizes = [8, 128], strides = [1, 1]} : vector<64x128xf32> to vector<8x128xf32>
    %cst_67 = arith.constant dense<0.000000e+00> : vector<8x128xf32>
    %281 = tpu.matmul %279, %247, %cst_67 {dimension_numbers = #tpu.dot_dimension_numbers<[1], [0], [0], [1], [0, 0, 1, 1], [], []>} : vector<8x32xf32>, vector<32x128xf32>, vector<8x128xf32> -> vector<8x128xf32>
    %282 = arith.addf %280, %281 : vector<8x128xf32>
    %283 = vector.extract_strided_slice %282 {offsets = [0, 0], sizes = [8, 32], strides = [1, 1]} : vector<8x128xf32> to vector<8x32xf32>
    %284 = arith.negf %283 : vector<8x32xf32>
    %285 = math.exp %284 : vector<8x32xf32>
    %cst_68 = arith.constant 1.000000e+00 : f32
    %286 = vector.broadcast %cst_68 : f32 to vector<8x32xf32>
    %287 = arith.addf %286, %285 : vector<8x32xf32>
    %288 = arith.divf %286, %287 : vector<8x32xf32>
    %289 = vector.extract_strided_slice %282 {offsets = [0, 32], sizes = [8, 32], strides = [1, 1]} : vector<8x128xf32> to vector<8x32xf32>
    %290 = arith.negf %289 : vector<8x32xf32>
    %291 = math.exp %290 : vector<8x32xf32>
    %cst_69 = arith.constant 1.000000e+00 : f32
    %292 = vector.broadcast %cst_69 : f32 to vector<8x32xf32>
    %293 = arith.addf %292, %291 : vector<8x32xf32>
    %294 = arith.divf %292, %293 : vector<8x32xf32>
    %295 = vector.extract_strided_slice %282 {offsets = [0, 64], sizes = [8, 32], strides = [1, 1]} : vector<8x128xf32> to vector<8x32xf32>
    %296 = math.tanh %295 : vector<8x32xf32>
    %297 = vector.extract_strided_slice %282 {offsets = [0, 96], sizes = [8, 32], strides = [1, 1]} : vector<8x128xf32> to vector<8x32xf32>
    %298 = arith.negf %297 : vector<8x32xf32>
    %299 = math.exp %298 : vector<8x32xf32>
    %cst_70 = arith.constant 1.000000e+00 : f32
    %300 = vector.broadcast %cst_70 : f32 to vector<8x32xf32>
    %301 = arith.addf %300, %299 : vector<8x32xf32>
    %302 = arith.divf %300, %301 : vector<8x32xf32>
    %303 = arith.mulf %294, %277 : vector<8x32xf32>
    %304 = arith.mulf %288, %296 : vector<8x32xf32>
    %305 = arith.addf %303, %304 : vector<8x32xf32>
    %306 = math.tanh %305 : vector<8x32xf32>
    %307 = arith.mulf %302, %306 : vector<8x32xf32>
    %308 = vector.extract_strided_slice %246 {offsets = [16, 0], sizes = [8, 128], strides = [1, 1]} : vector<64x128xf32> to vector<8x128xf32>
    %cst_71 = arith.constant dense<0.000000e+00> : vector<8x128xf32>
    %309 = tpu.matmul %307, %247, %cst_71 {dimension_numbers = #tpu.dot_dimension_numbers<[1], [0], [0], [1], [0, 0, 1, 1], [], []>} : vector<8x32xf32>, vector<32x128xf32>, vector<8x128xf32> -> vector<8x128xf32>
    %310 = arith.addf %308, %309 : vector<8x128xf32>
    %311 = vector.extract_strided_slice %310 {offsets = [0, 0], sizes = [8, 32], strides = [1, 1]} : vector<8x128xf32> to vector<8x32xf32>
    %312 = arith.negf %311 : vector<8x32xf32>
    %313 = math.exp %312 : vector<8x32xf32>
    %cst_72 = arith.constant 1.000000e+00 : f32
    %314 = vector.broadcast %cst_72 : f32 to vector<8x32xf32>
    %315 = arith.addf %314, %313 : vector<8x32xf32>
    %316 = arith.divf %314, %315 : vector<8x32xf32>
    %317 = vector.extract_strided_slice %310 {offsets = [0, 32], sizes = [8, 32], strides = [1, 1]} : vector<8x128xf32> to vector<8x32xf32>
    %318 = arith.negf %317 : vector<8x32xf32>
    %319 = math.exp %318 : vector<8x32xf32>
    %cst_73 = arith.constant 1.000000e+00 : f32
    %320 = vector.broadcast %cst_73 : f32 to vector<8x32xf32>
    %321 = arith.addf %320, %319 : vector<8x32xf32>
    %322 = arith.divf %320, %321 : vector<8x32xf32>
    %323 = vector.extract_strided_slice %310 {offsets = [0, 64], sizes = [8, 32], strides = [1, 1]} : vector<8x128xf32> to vector<8x32xf32>
    %324 = math.tanh %323 : vector<8x32xf32>
    %325 = vector.extract_strided_slice %310 {offsets = [0, 96], sizes = [8, 32], strides = [1, 1]} : vector<8x128xf32> to vector<8x32xf32>
    %326 = arith.negf %325 : vector<8x32xf32>
    %327 = math.exp %326 : vector<8x32xf32>
    %cst_74 = arith.constant 1.000000e+00 : f32
    %328 = vector.broadcast %cst_74 : f32 to vector<8x32xf32>
    %329 = arith.addf %328, %327 : vector<8x32xf32>
    %330 = arith.divf %328, %329 : vector<8x32xf32>
    %331 = arith.mulf %322, %305 : vector<8x32xf32>
    %332 = arith.mulf %316, %324 : vector<8x32xf32>
    %333 = arith.addf %331, %332 : vector<8x32xf32>
    %334 = math.tanh %333 : vector<8x32xf32>
    %335 = arith.mulf %330, %334 : vector<8x32xf32>
    %336 = vector.extract_strided_slice %246 {offsets = [24, 0], sizes = [8, 128], strides = [1, 1]} : vector<64x128xf32> to vector<8x128xf32>
    %cst_75 = arith.constant dense<0.000000e+00> : vector<8x128xf32>
    %337 = tpu.matmul %335, %247, %cst_75 {dimension_numbers = #tpu.dot_dimension_numbers<[1], [0], [0], [1], [0, 0, 1, 1], [], []>} : vector<8x32xf32>, vector<32x128xf32>, vector<8x128xf32> -> vector<8x128xf32>
    %338 = arith.addf %336, %337 : vector<8x128xf32>
    %339 = vector.extract_strided_slice %338 {offsets = [0, 0], sizes = [8, 32], strides = [1, 1]} : vector<8x128xf32> to vector<8x32xf32>
    %340 = arith.negf %339 : vector<8x32xf32>
    %341 = math.exp %340 : vector<8x32xf32>
    %cst_76 = arith.constant 1.000000e+00 : f32
    %342 = vector.broadcast %cst_76 : f32 to vector<8x32xf32>
    %343 = arith.addf %342, %341 : vector<8x32xf32>
    %344 = arith.divf %342, %343 : vector<8x32xf32>
    %345 = vector.extract_strided_slice %338 {offsets = [0, 32], sizes = [8, 32], strides = [1, 1]} : vector<8x128xf32> to vector<8x32xf32>
    %346 = arith.negf %345 : vector<8x32xf32>
    %347 = math.exp %346 : vector<8x32xf32>
    %cst_77 = arith.constant 1.000000e+00 : f32
    %348 = vector.broadcast %cst_77 : f32 to vector<8x32xf32>
    %349 = arith.addf %348, %347 : vector<8x32xf32>
    %350 = arith.divf %348, %349 : vector<8x32xf32>
    %351 = vector.extract_strided_slice %338 {offsets = [0, 64], sizes = [8, 32], strides = [1, 1]} : vector<8x128xf32> to vector<8x32xf32>
    %352 = math.tanh %351 : vector<8x32xf32>
    %353 = vector.extract_strided_slice %338 {offsets = [0, 96], sizes = [8, 32], strides = [1, 1]} : vector<8x128xf32> to vector<8x32xf32>
    %354 = arith.negf %353 : vector<8x32xf32>
    %355 = math.exp %354 : vector<8x32xf32>
    %cst_78 = arith.constant 1.000000e+00 : f32
    %356 = vector.broadcast %cst_78 : f32 to vector<8x32xf32>
    %357 = arith.addf %356, %355 : vector<8x32xf32>
    %358 = arith.divf %356, %357 : vector<8x32xf32>
    %359 = arith.mulf %350, %333 : vector<8x32xf32>
    %360 = arith.mulf %344, %352 : vector<8x32xf32>
    %361 = arith.addf %359, %360 : vector<8x32xf32>
    %362 = math.tanh %361 : vector<8x32xf32>
    %363 = arith.mulf %358, %362 : vector<8x32xf32>
    %364 = vector.extract_strided_slice %246 {offsets = [32, 0], sizes = [8, 128], strides = [1, 1]} : vector<64x128xf32> to vector<8x128xf32>
    %cst_79 = arith.constant dense<0.000000e+00> : vector<8x128xf32>
    %365 = tpu.matmul %363, %247, %cst_79 {dimension_numbers = #tpu.dot_dimension_numbers<[1], [0], [0], [1], [0, 0, 1, 1], [], []>} : vector<8x32xf32>, vector<32x128xf32>, vector<8x128xf32> -> vector<8x128xf32>
    %366 = arith.addf %364, %365 : vector<8x128xf32>
    %367 = vector.extract_strided_slice %366 {offsets = [0, 0], sizes = [8, 32], strides = [1, 1]} : vector<8x128xf32> to vector<8x32xf32>
    %368 = arith.negf %367 : vector<8x32xf32>
    %369 = math.exp %368 : vector<8x32xf32>
    %cst_80 = arith.constant 1.000000e+00 : f32
    %370 = vector.broadcast %cst_80 : f32 to vector<8x32xf32>
    %371 = arith.addf %370, %369 : vector<8x32xf32>
    %372 = arith.divf %370, %371 : vector<8x32xf32>
    %373 = vector.extract_strided_slice %366 {offsets = [0, 32], sizes = [8, 32], strides = [1, 1]} : vector<8x128xf32> to vector<8x32xf32>
    %374 = arith.negf %373 : vector<8x32xf32>
    %375 = math.exp %374 : vector<8x32xf32>
    %cst_81 = arith.constant 1.000000e+00 : f32
    %376 = vector.broadcast %cst_81 : f32 to vector<8x32xf32>
    %377 = arith.addf %376, %375 : vector<8x32xf32>
    %378 = arith.divf %376, %377 : vector<8x32xf32>
    %379 = vector.extract_strided_slice %366 {offsets = [0, 64], sizes = [8, 32], strides = [1, 1]} : vector<8x128xf32> to vector<8x32xf32>
    %380 = math.tanh %379 : vector<8x32xf32>
    %381 = vector.extract_strided_slice %366 {offsets = [0, 96], sizes = [8, 32], strides = [1, 1]} : vector<8x128xf32> to vector<8x32xf32>
    %382 = arith.negf %381 : vector<8x32xf32>
    %383 = math.exp %382 : vector<8x32xf32>
    %cst_82 = arith.constant 1.000000e+00 : f32
    %384 = vector.broadcast %cst_82 : f32 to vector<8x32xf32>
    %385 = arith.addf %384, %383 : vector<8x32xf32>
    %386 = arith.divf %384, %385 : vector<8x32xf32>
    %387 = arith.mulf %378, %361 : vector<8x32xf32>
    %388 = arith.mulf %372, %380 : vector<8x32xf32>
    %389 = arith.addf %387, %388 : vector<8x32xf32>
    %390 = math.tanh %389 : vector<8x32xf32>
    %391 = arith.mulf %386, %390 : vector<8x32xf32>
    %392 = vector.extract_strided_slice %246 {offsets = [40, 0], sizes = [8, 128], strides = [1, 1]} : vector<64x128xf32> to vector<8x128xf32>
    %cst_83 = arith.constant dense<0.000000e+00> : vector<8x128xf32>
    %393 = tpu.matmul %391, %247, %cst_83 {dimension_numbers = #tpu.dot_dimension_numbers<[1], [0], [0], [1], [0, 0, 1, 1], [], []>} : vector<8x32xf32>, vector<32x128xf32>, vector<8x128xf32> -> vector<8x128xf32>
    %394 = arith.addf %392, %393 : vector<8x128xf32>
    %395 = vector.extract_strided_slice %394 {offsets = [0, 0], sizes = [8, 32], strides = [1, 1]} : vector<8x128xf32> to vector<8x32xf32>
    %396 = arith.negf %395 : vector<8x32xf32>
    %397 = math.exp %396 : vector<8x32xf32>
    %cst_84 = arith.constant 1.000000e+00 : f32
    %398 = vector.broadcast %cst_84 : f32 to vector<8x32xf32>
    %399 = arith.addf %398, %397 : vector<8x32xf32>
    %400 = arith.divf %398, %399 : vector<8x32xf32>
    %401 = vector.extract_strided_slice %394 {offsets = [0, 32], sizes = [8, 32], strides = [1, 1]} : vector<8x128xf32> to vector<8x32xf32>
    %402 = arith.negf %401 : vector<8x32xf32>
    %403 = math.exp %402 : vector<8x32xf32>
    %cst_85 = arith.constant 1.000000e+00 : f32
    %404 = vector.broadcast %cst_85 : f32 to vector<8x32xf32>
    %405 = arith.addf %404, %403 : vector<8x32xf32>
    %406 = arith.divf %404, %405 : vector<8x32xf32>
    %407 = vector.extract_strided_slice %394 {offsets = [0, 64], sizes = [8, 32], strides = [1, 1]} : vector<8x128xf32> to vector<8x32xf32>
    %408 = math.tanh %407 : vector<8x32xf32>
    %409 = vector.extract_strided_slice %394 {offsets = [0, 96], sizes = [8, 32], strides = [1, 1]} : vector<8x128xf32> to vector<8x32xf32>
    %410 = arith.negf %409 : vector<8x32xf32>
    %411 = math.exp %410 : vector<8x32xf32>
    %cst_86 = arith.constant 1.000000e+00 : f32
    %412 = vector.broadcast %cst_86 : f32 to vector<8x32xf32>
    %413 = arith.addf %412, %411 : vector<8x32xf32>
    %414 = arith.divf %412, %413 : vector<8x32xf32>
    %415 = arith.mulf %406, %389 : vector<8x32xf32>
    %416 = arith.mulf %400, %408 : vector<8x32xf32>
    %417 = arith.addf %415, %416 : vector<8x32xf32>
    %418 = math.tanh %417 : vector<8x32xf32>
    %419 = arith.mulf %414, %418 : vector<8x32xf32>
    %420 = vector.extract_strided_slice %246 {offsets = [48, 0], sizes = [8, 128], strides = [1, 1]} : vector<64x128xf32> to vector<8x128xf32>
    %cst_87 = arith.constant dense<0.000000e+00> : vector<8x128xf32>
    %421 = tpu.matmul %419, %247, %cst_87 {dimension_numbers = #tpu.dot_dimension_numbers<[1], [0], [0], [1], [0, 0, 1, 1], [], []>} : vector<8x32xf32>, vector<32x128xf32>, vector<8x128xf32> -> vector<8x128xf32>
    %422 = arith.addf %420, %421 : vector<8x128xf32>
    %423 = vector.extract_strided_slice %422 {offsets = [0, 0], sizes = [8, 32], strides = [1, 1]} : vector<8x128xf32> to vector<8x32xf32>
    %424 = arith.negf %423 : vector<8x32xf32>
    %425 = math.exp %424 : vector<8x32xf32>
    %cst_88 = arith.constant 1.000000e+00 : f32
    %426 = vector.broadcast %cst_88 : f32 to vector<8x32xf32>
    %427 = arith.addf %426, %425 : vector<8x32xf32>
    %428 = arith.divf %426, %427 : vector<8x32xf32>
    %429 = vector.extract_strided_slice %422 {offsets = [0, 32], sizes = [8, 32], strides = [1, 1]} : vector<8x128xf32> to vector<8x32xf32>
    %430 = arith.negf %429 : vector<8x32xf32>
    %431 = math.exp %430 : vector<8x32xf32>
    %cst_89 = arith.constant 1.000000e+00 : f32
    %432 = vector.broadcast %cst_89 : f32 to vector<8x32xf32>
    %433 = arith.addf %432, %431 : vector<8x32xf32>
    %434 = arith.divf %432, %433 : vector<8x32xf32>
    %435 = vector.extract_strided_slice %422 {offsets = [0, 64], sizes = [8, 32], strides = [1, 1]} : vector<8x128xf32> to vector<8x32xf32>
    %436 = math.tanh %435 : vector<8x32xf32>
    %437 = vector.extract_strided_slice %422 {offsets = [0, 96], sizes = [8, 32], strides = [1, 1]} : vector<8x128xf32> to vector<8x32xf32>
    %438 = arith.negf %437 : vector<8x32xf32>
    %439 = math.exp %438 : vector<8x32xf32>
    %cst_90 = arith.constant 1.000000e+00 : f32
    %440 = vector.broadcast %cst_90 : f32 to vector<8x32xf32>
    %441 = arith.addf %440, %439 : vector<8x32xf32>
    %442 = arith.divf %440, %441 : vector<8x32xf32>
    %443 = arith.mulf %434, %417 : vector<8x32xf32>
    %444 = arith.mulf %428, %436 : vector<8x32xf32>
    %445 = arith.addf %443, %444 : vector<8x32xf32>
    %446 = math.tanh %445 : vector<8x32xf32>
    %447 = arith.mulf %442, %446 : vector<8x32xf32>
    %448 = vector.extract_strided_slice %246 {offsets = [56, 0], sizes = [8, 128], strides = [1, 1]} : vector<64x128xf32> to vector<8x128xf32>
    %cst_91 = arith.constant dense<0.000000e+00> : vector<8x128xf32>
    %449 = tpu.matmul %447, %247, %cst_91 {dimension_numbers = #tpu.dot_dimension_numbers<[1], [0], [0], [1], [0, 0, 1, 1], [], []>} : vector<8x32xf32>, vector<32x128xf32>, vector<8x128xf32> -> vector<8x128xf32>
    %450 = arith.addf %448, %449 : vector<8x128xf32>
    %451 = vector.extract_strided_slice %450 {offsets = [0, 0], sizes = [8, 32], strides = [1, 1]} : vector<8x128xf32> to vector<8x32xf32>
    %452 = arith.negf %451 : vector<8x32xf32>
    %453 = math.exp %452 : vector<8x32xf32>
    %cst_92 = arith.constant 1.000000e+00 : f32
    %454 = vector.broadcast %cst_92 : f32 to vector<8x32xf32>
    %455 = arith.addf %454, %453 : vector<8x32xf32>
    %456 = arith.divf %454, %455 : vector<8x32xf32>
    %457 = vector.extract_strided_slice %450 {offsets = [0, 32], sizes = [8, 32], strides = [1, 1]} : vector<8x128xf32> to vector<8x32xf32>
    %458 = arith.negf %457 : vector<8x32xf32>
    %459 = math.exp %458 : vector<8x32xf32>
    %cst_93 = arith.constant 1.000000e+00 : f32
    %460 = vector.broadcast %cst_93 : f32 to vector<8x32xf32>
    %461 = arith.addf %460, %459 : vector<8x32xf32>
    %462 = arith.divf %460, %461 : vector<8x32xf32>
    %463 = vector.extract_strided_slice %450 {offsets = [0, 64], sizes = [8, 32], strides = [1, 1]} : vector<8x128xf32> to vector<8x32xf32>
    %464 = math.tanh %463 : vector<8x32xf32>
    %465 = vector.extract_strided_slice %450 {offsets = [0, 96], sizes = [8, 32], strides = [1, 1]} : vector<8x128xf32> to vector<8x32xf32>
    %466 = arith.negf %465 : vector<8x32xf32>
    %467 = math.exp %466 : vector<8x32xf32>
    %cst_94 = arith.constant 1.000000e+00 : f32
    %468 = vector.broadcast %cst_94 : f32 to vector<8x32xf32>
    %469 = arith.addf %468, %467 : vector<8x32xf32>
    %470 = arith.divf %468, %469 : vector<8x32xf32>
    %471 = arith.mulf %462, %445 : vector<8x32xf32>
    %472 = arith.mulf %456, %464 : vector<8x32xf32>
    %473 = arith.addf %471, %472 : vector<8x32xf32>
    %474 = math.tanh %473 : vector<8x32xf32>
    %475 = arith.mulf %470, %474 : vector<8x32xf32>
    %c1_95 = arith.constant 1 : index
    %c0_96 = arith.constant 0 : index
    %c0_97 = arith.constant 0 : index
    %476 = vector.load %arg12[%c1_95, %c0_96, %c0_97] : memref<2x8x32xf32, #tpu.memory_space<vmem>>, vector<1x8x32xf32>
    %477 = vector.shape_cast %476 : vector<1x8x32xf32> to vector<8x32xf32>
    %478 = vector.shape_cast %475 : vector<8x32xf32> to vector<1x8x32xf32>
    tpu.vector_store %arg12[%c1_95, %c0_96, %c0_97], %478 {strides = array<i32>} : memref<2x8x32xf32, #tpu.memory_space<vmem>>, vector<1x8x32xf32>,
    %c1_98 = arith.constant 1 : index
    %c0_99 = arith.constant 0 : index
    %c0_100 = arith.constant 0 : index
    %479 = vector.load %arg13[%c1_98, %c0_99, %c0_100] : memref<2x8x32xf32, #tpu.memory_space<vmem>>, vector<1x8x32xf32>
    %480 = vector.shape_cast %479 : vector<1x8x32xf32> to vector<8x32xf32>
    %481 = vector.shape_cast %473 : vector<8x32xf32> to vector<1x8x32xf32>
    tpu.vector_store %arg13[%c1_98, %c0_99, %c0_100], %481 {strides = array<i32>} : memref<2x8x32xf32, #tpu.memory_space<vmem>>, vector<1x8x32xf32>,
    %482 = tpu.concatenate %279, %307, %335, %363, %391, %419, %447, %475 in 0 : vector<8x32xf32>, vector<8x32xf32>, vector<8x32xf32>, vector<8x32xf32>, vector<8x32xf32>, vector<8x32xf32>, vector<8x32xf32>, vector<8x32xf32> -> vector<64x32xf32>
    %c0_101 = arith.constant 0 : index
    %c0_102 = arith.constant 0 : index
    %483 = vector.load %arg9[%c0_101, %c0_102] : memref<32x11xf32, #tpu.memory_space<vmem>>, vector<32x11xf32>
    %cst_103 = arith.constant dense<0.000000e+00> : vector<64x11xf32>
    %484 = tpu.matmul %482, %483, %cst_103 {dimension_numbers = #tpu.dot_dimension_numbers<[1], [0], [0], [1], [0, 0, 1, 1], [], []>} : vector<64x32xf32>, vector<32x11xf32>, vector<64x11xf32> -> vector<64x11xf32>
    %c0_104 = arith.constant 0 : index
    %c0_105 = arith.constant 0 : index
    %485 = vector.load %arg10[%c0_104, %c0_105] : memref<1x11xf32, #tpu.memory_space<vmem>>, vector<1x11xf32>
    %486 = vector.broadcast %485 : vector<1x11xf32> to vector<64x11xf32>
    %487 = arith.addf %484, %486 : vector<64x11xf32>
    %cst_106 = arith.constant dense<0xFF800000> : vector<64xf32>
    %488 = vector.multi_reduction <maximumf>, %487, %cst_106 [1] : vector<64x11xf32> to vector<64xf32>
    %489 = vector.shape_cast %488 : vector<64xf32> to vector<64x1xf32>
    %490 = vector.broadcast %489 : vector<64x1xf32> to vector<64x11xf32>
    %491 = arith.subf %487, %490 : vector<64x11xf32>
    %492 = math.exp %491 : vector<64x11xf32>
    %cst_107 = arith.constant dense<0.000000e+00> : vector<64xf32>
    %493 = vector.multi_reduction <add>, %492, %cst_107 [1] : vector<64x11xf32> to vector<64xf32>
    %494 = vector.shape_cast %493 : vector<64xf32> to vector<64x1xf32>
    %495 = math.log %494 : vector<64x1xf32>
    %496 = vector.broadcast %495 : vector<64x1xf32> to vector<64x11xf32>
    %497 = arith.subf %491, %496 : vector<64x11xf32>
    %c0_108 = arith.constant 0 : index
    %c0_109 = arith.constant 0 : index
    %498 = vector.load %arg11[%c0_108, %c0_109] : memref<64x11xf32, #tpu.memory_space<vmem>>, vector<64x11xf32>
    tpu.vector_store %arg11[%c0_108, %c0_109], %497 {strides = array<i32>} : memref<64x11xf32, #tpu.memory_space<vmem>>, vector<64x11xf32>,
    return
  }
}

</mosaic_0001>

<llo_original>
// kernel: stacked_lstm_forward.1
$region0: #{stacked_lstm_forward.1}
  #allocation0 [shape = 'u32[]', space=smem, size = 0x4, offset = 0x4, fixed_abs, tag = 'smem constant byte address 0x4 - core index']
  #allocation1 [shape = 'u32[144,128]{1,0:T(1,128)}', space=vmem, size = 0x12000, scoped, tag = 'internal scratch']
  %s0 = inlined_call_operand.vmem [shape: f32[64,16], index: 0, kind: input, shape index: {}]
  %s1 = inlined_call_operand.vmem [shape: f32[2,8,32], index: 1, kind: input, shape index: {}]
  %s2 = inlined_call_operand.hbm [shape: f32[2,8,32], index: 2, kind: input, shape index: {}]
  %s3 = inlined_call_operand.hbm [shape: f32[16,128], index: 3, kind: input, shape index: {}]
  %s4 = inlined_call_operand.hbm [shape: f32[32,128], index: 4, kind: input, shape index: {}]
  %s5 = inlined_call_operand.vmem [shape: f32[1,128], index: 5, kind: input, shape index: {}]
  %s6 = inlined_call_operand.hbm [shape: f32[32,128], index: 6, kind: input, shape index: {}]
  %s7 = inlined_call_operand.hbm [shape: f32[32,128], index: 7, kind: input, shape index: {}]
  %s8 = inlined_call_operand.vmem [shape: f32[1,128], index: 8, kind: input, shape index: {}]
  %s9 = inlined_call_operand.vmem [shape: f32[32,11], index: 9, kind: input, shape index: {}]
  %s10 = inlined_call_operand.hbm [shape: f32[1,11], index: 10, kind: input, shape index: {}]
  %s11 = inlined_call_operand.hbm [shape: f32[64,11], index: 11, kind: output, shape index: {0}]
  %s12 = inlined_call_operand.hbm [shape: f32[2,8,32], index: 12, kind: output, shape index: {1}]
  %s13 = inlined_call_operand.hbm [shape: f32[2,8,32], index: 13, kind: output, shape index: {2}]
  %14 = xla_tuple %s11, %s12, %s13
  %s15 = sld [smem:[#allocation0]]
  $region94: #{stacked_lstm_forward.1} parent=0
    _
  %s17 = ssub.s32 1, %s15
  %s18 = scalar_select 0, %s17, %s15
  $region1: #{stacked_lstm_forward.1} parent=0
    #allocation2 [shape = 'u8[8192]{0}', space=vmem, size = 0x2000, scoped, tag = 'input window, operand 2, single buffered']
    #allocation3 [shape = 's32[1]{0}', space=sflag, size = 0x4, scoped, tag = 'scoped memory for stacked_lstm_forward.1']
    #allocation4 [shape = 's32[1]{0}', space=sflag, size = 0x4, scoped, tag = 'scoped memory for stacked_lstm_forward.1']
    #allocation5 [shape = 'u8[8192]{0}', space=vmem, size = 0x2000, scoped, tag = 'input window, operand 3, single buffered']
    #allocation6 [shape = 's32[1]{0}', space=sflag, size = 0x4, scoped, tag = 'scoped memory for stacked_lstm_forward.1']
    #allocation7 [shape = 'u8[16384]{0}', space=vmem, size = 0x4000, scoped, tag = 'input window, operand 4, single buffered']
    #allocation8 [shape = 'u8[16384]{0}', space=vmem, size = 0x4000, scoped, tag = 'input window, operand 6, single buffered']
    #allocation9 [shape = 's32[1]{0}', space=sflag, size = 0x4, scoped, tag = 'scoped memory for stacked_lstm_forward.1']
    #allocation10 [shape = 'u8[16384]{0}', space=vmem, size = 0x4000, scoped, tag = 'input window, operand 7, single buffered']
    #allocation11 [shape = 'u8[512]{0}', space=vmem, size = 0x400, scoped, tag = 'input window, operand 10, single buffered']
    #allocation12 [shape = 's32[1]{0}', space=sflag, size = 0x4, scoped, tag = 'scoped memory for stacked_lstm_forward.1']
    #allocation13 [shape = 'u8[32768]{0}', space=vmem, size = 0x8000, scoped, tag = 'output window, operand 0, single buffered']
    #allocation14 [shape = 'u8[8192]{0}', space=vmem, size = 0x2000, scoped, tag = 'output window, operand 1, single buffered']
    #allocation15 [shape = 's32[1]{0}', space=sflag, size = 0x4, scoped, tag = 'scoped memory for stacked_lstm_forward.1']
    #allocation16 [shape = 'u8[8192]{0}', space=vmem, size = 0x2000, scoped, tag = 'output window, operand 2, single buffered']
    %19 = vsyncpa [#allocation3], 0
    %20 = vsyncpa [#allocation6], 0
    %21 = vsyncpa [#allocation9], 0
    %22 = vsyncpa [#allocation12], 0
    %23 = vsyncpa [#allocation4], 0
    %24 = vsyncpa [#allocation15], 0
    // Predicated region
    $region2: #{stacked_lstm_forward.1} parent=1 // pred_check
      _
    $region3: #{stacked_lstm_forward.1} parent=1 // pred_check_branch
      %26 = sbr.rel (0) target = $region5
    $region4: #{stacked_lstm_forward.1} parent=1 // pred_region
      _
    $region5: #{stacked_lstm_forward.1} parent=1 // pred_fallthru
      _
    // Predicated region
    $region6: #{stacked_lstm_forward.1} parent=1 // pred_check
      _
    $region7: #{stacked_lstm_forward.1} parent=1 // pred_check_branch
      %28 = sbr.rel (0) target = $region9
    $region8: #{stacked_lstm_forward.1} parent=1 // pred_region
      _
    $region9: #{stacked_lstm_forward.1} parent=1 // pred_fallthru
      _
    // Predicated region
    $region10: #{stacked_lstm_forward.1} parent=1 // pred_check
      _
    $region11: #{stacked_lstm_forward.1} parent=1 // pred_check_branch
      %30 = sbr.rel (0) target = $region13
    $region12: #{stacked_lstm_forward.1} parent=1 // pred_region
      %s32 = ssub.s32 256, 256
      %33 = vsyncadd [#allocation3], %s32
      %s34 = sshll.u32 [#allocation2], 4
      %s35 = int_to_ptr.vmem [resolvable:$true] %s34
      %40 = dma.hbm_to_vmem [thread:$0]  %s2, 256, %s35, [#allocation3], 128, 128, 8
    $region13: #{stacked_lstm_forward.1} parent=1 // pred_fallthru
      _
    // Predicated region
    $region14: #{stacked_lstm_forward.1} parent=1 // pred_check
      _
    $region15: #{stacked_lstm_forward.1} parent=1 // pred_check_branch
      %42 = sbr.rel (0) target = $region17
    $region16: #{stacked_lstm_forward.1} parent=1 // pred_region
      %s44 = ssub.s32 256, 256
      %45 = vsyncadd [#allocation6], %s44
      %s46 = sshll.u32 [#allocation5], 4
      %s47 = int_to_ptr.vmem [resolvable:$true] %s46
      %52 = dma.hbm_to_vmem [thread:$0]  %s3, 256, %s47, [#allocation6], 128, 128, 8
    $region17: #{stacked_lstm_forward.1} parent=1 // pred_fallthru
      _
    // Predicated region
    $region18: #{stacked_lstm_forward.1} parent=1 // pred_check
      _
    $region19: #{stacked_lstm_forward.1} parent=1 // pred_check_branch
      %54 = sbr.rel (0) target = $region21
    $region20: #{stacked_lstm_forward.1} parent=1 // pred_region
      %s56 = ssub.s32 512, 512
      %57 = vsyncadd [#allocation6], %s56
      %s58 = sshll.u32 [#allocation7], 4
      %s59 = int_to_ptr.vmem [resolvable:$true] %s58
      %64 = dma.hbm_to_vmem [thread:$0]  %s4, 512, %s59, [#allocation6], 128, 128, 8
    $region21: #{stacked_lstm_forward.1} parent=1 // pred_fallthru
      _
    // Predicated region
    $region22: #{stacked_lstm_forward.1} parent=1 // pred_check
      _
    $region23: #{stacked_lstm_forward.1} parent=1 // pred_check_branch
      %66 = sbr.rel (0) target = $region25
    $region24: #{stacked_lstm_forward.1} parent=1 // pred_region
      _
    $region25: #{stacked_lstm_forward.1} parent=1 // pred_fallthru
      _
    // Predicated region
    $region26: #{stacked_lstm_forward.1} parent=1 // pred_check
      _
    $region27: #{stacked_lstm_forward.1} parent=1 // pred_check_branch
      %68 = sbr.rel (0) target = $region29
    $region28: #{stacked_lstm_forward.1} parent=1 // pred_region
      %s70 = ssub.s32 512, 512
      %71 = vsyncadd [#allocation9], %s70
      %s72 = sshll.u32 [#allocation8], 4
      %s73 = int_to_ptr.vmem [resolvable:$true] %s72
      %78 = dma.hbm_to_vmem [thread:$0]  %s6, 512, %s73, [#allocation9], 128, 128, 8
    $region29: #{stacked_lstm_forward.1} parent=1 // pred_fallthru
      _
    // Predicated region
    $region30: #{stacked_lstm_forward.1} parent=1 // pred_check
      _
    $region31: #{stacked_lstm_forward.1} parent=1 // pred_check_branch
      %80 = sbr.rel (0) target = $region33
    $region32: #{stacked_lstm_forward.1} parent=1 // pred_region
      %s82 = ssub.s32 512, 512
      %83 = vsyncadd [#allocation9], %s82
      %s84 = sshll.u32 [#allocation10], 4
      %s85 = int_to_ptr.vmem [resolvable:$true] %s84
      %90 = dma.hbm_to_vmem [thread:$0]  %s7, 512, %s85, [#allocation9], 128, 128, 8
    $region33: #{stacked_lstm_forward.1} parent=1 // pred_fallthru
      _
    // Predicated region
    $region34: #{stacked_lstm_forward.1} parent=1 // pred_check
      _
    $region35: #{stacked_lstm_forward.1} parent=1 // pred_check_branch
      %92 = sbr.rel (0) target = $region37
    $region36: #{stacked_lstm_forward.1} parent=1 // pred_region
      _
    $region37: #{stacked_lstm_forward.1} parent=1 // pred_fallthru
      _
    // Predicated region
    $region38: #{stacked_lstm_forward.1} parent=1 // pred_check
      _
    $region39: #{stacked_lstm_forward.1} parent=1 // pred_check_branch
      %94 = sbr.rel (0) target = $region41
    $region40: #{stacked_lstm_forward.1} parent=1 // pred_region
      _
    $region41: #{stacked_lstm_forward.1} parent=1 // pred_fallthru
      _
    // Predicated region
    $region42: #{stacked_lstm_forward.1} parent=1 // pred_check
      _
    $region43: #{stacked_lstm_forward.1} parent=1 // pred_check_branch
      %96 = sbr.rel (0) target = $region45
    $region44: #{stacked_lstm_forward.1} parent=1 // pred_region
      %s98 = ssub.s32 16, 16
      %99 = vsyncadd [#allocation12], %s98
      %s101 = sshll.u32 [#allocation11], 4
      %s102 = int_to_ptr.vmem [resolvable:$true] %s101
      %104 = dma.hbm_to_vmem [thread:$0]  %s10, 16, %s102, [#allocation12]
    $region45: #{stacked_lstm_forward.1} parent=1 // pred_fallthru
      _
    // Predicated region
    $region46: #{stacked_lstm_forward.1} parent=1 // pred_check
      _
    $region47: #{stacked_lstm_forward.1} parent=1 // pred_check_branch
      %106 = sbr.rel (0) target = $region49
    $region48: #{stacked_lstm_forward.1} parent=1 // pred_region
      %107 = dma.done [#allocation3], 256
    $region49: #{stacked_lstm_forward.1} parent=1 // pred_fallthru
      _
    // Predicated region
    $region50: #{stacked_lstm_forward.1} parent=1 // pred_check
      _
    $region51: #{stacked_lstm_forward.1} parent=1 // pred_check_branch
      %109 = sbr.rel (0) target = $region53
    $region52: #{stacked_lstm_forward.1} parent=1 // pred_region
      %110 = dma.done [#allocation6], 256
    $region53: #{stacked_lstm_forward.1} parent=1 // pred_fallthru
      _
    // Predicated region
    $region54: #{stacked_lstm_forward.1} parent=1 // pred_check
      _
    $region55: #{stacked_lstm_forward.1} parent=1 // pred_check_branch
      %112 = sbr.rel (0) target = $region57
    $region56: #{stacked_lstm_forward.1} parent=1 // pred_region
      %113 = dma.done [#allocation6], 512
    $region57: #{stacked_lstm_forward.1} parent=1 // pred_fallthru
      _
    // Predicated region
    $region58: #{stacked_lstm_forward.1} parent=1 // pred_check
      _
    $region59: #{stacked_lstm_forward.1} parent=1 // pred_check_branch
      %115 = sbr.rel (0) target = $region61
    $region60: #{stacked_lstm_forward.1} parent=1 // pred_region
      %116 = dma.done [#allocation9], 512
    $region61: #{stacked_lstm_forward.1} parent=1 // pred_fallthru
      _
    // Predicated region
    $region62: #{stacked_lstm_forward.1} parent=1 // pred_check
      _
    $region63: #{stacked_lstm_forward.1} parent=1 // pred_check_branch
      %118 = sbr.rel (0) target = $region65
    $region64: #{stacked_lstm_forward.1} parent=1 // pred_region
      %119 = dma.done [#allocation9], 512
    $region65: #{stacked_lstm_forward.1} parent=1 // pred_fallthru
      _
    // Predicated region
    $region66: #{stacked_lstm_forward.1} parent=1 // pred_check
      _
    $region67: #{stacked_lstm_forward.1} parent=1 // pred_check_branch
      %121 = sbr.rel (0) target = $region69
    $region68: #{stacked_lstm_forward.1} parent=1 // pred_region
      %122 = dma.done [#allocation12], 16
    $region69: #{stacked_lstm_forward.1} parent=1 // pred_fallthru
      _
    %v123 = vld [vmem:[%s0] sm:$0xff]
    %v124 = vld [vmem:[%s0 + $0x8] sm:$0xff]
    %v125 = vld [vmem:[%s0 + $0x10] sm:$0xff]
    %v126 = vld [vmem:[%s0 + $0x18] sm:$0xff]
    %v127 = vld [vmem:[%s0 + $0x20] sm:$0xff]
    %v128 = vld [vmem:[%s0 + $0x28] sm:$0xff]
    %v129 = vld [vmem:[%s0 + $0x30] sm:$0xff]
    %v130 = vld [vmem:[%s0 + $0x38] sm:$0xff]
    %v131 = vld [vmem:[#allocation5] sm:$0xff]
    %v132 = vld [vmem:[#allocation5 + $0x8] sm:$0xff]
    %v133 = vld [vmem:[%s5] sm:$0x1]
    %v135 = vlaneseq
    %v136 = vshrl.u32 %v135, 7
    %v137 = vsub.s32 0, %v136
    %v138 = vrot.slane %v133, %v137
    %vm140 = vcmask 130048
    %v142 = vsel %vm140, %v123, 0
    %v145 = vsel %vm140, %v124, 0
    %v148 = vsel %vm140, %v125, 0
    %v151 = vsel %vm140, %v126, 0
    %v154 = vsel %vm140, %v127, 0
    %v157 = vsel %vm140, %v128, 0
    %v160 = vsel %vm140, %v129, 0
    %v163 = vsel %vm140, %v130, 0
    %165 = vmatprep.subr.mxu0 0.0
    %166 = vmatpush1.msra.mxu0 %v131
    %167 = vmatprep.subr.mxu0 0.0
    %168 = vmatpush1.msra.mxu0 %v132
    %169 = vmatprep.subr.mxu0 0.0
    %170 = vmatpush1.msra.mxu0 0.0
    %171 = vmatprep.subr.mxu0 0.0
    %172 = vmatpush1.msra.mxu0 0.0
    %173 = vmatprep.subr.mxu0 0.0
    %174 = vmatpush1.msra.mxu0 0.0
    %175 = vmatprep.subr.mxu0 0.0
    %176 = vmatpush1.msra.mxu0 0.0
    %177 = vmatprep.subr.mxu0 0.0
    %178 = vmatpush1.msra.mxu0 0.0
    %179 = vmatprep.subr.mxu0 0.0
    %180 = vmatpush1.msra.mxu0 0.0
    %181 = vmatprep.subr.mxu0 0.0
    %182 = vmatpush1.msra.mxu0 0.0
    %183 = vmatprep.subr.mxu0 0.0
    %184 = vmatpush1.msra.mxu0 0.0
    %185 = vmatprep.subr.mxu0 0.0
    %186 = vmatpush1.msra.mxu0 0.0
    %187 = vmatprep.subr.mxu0 0.0
    %188 = vmatpush1.msra.mxu0 0.0
    %189 = vmatprep.subr.mxu0 0.0
    %190 = vmatpush1.msra.mxu0 0.0
    %191 = vmatprep.subr.mxu0 0.0
    %192 = vmatpush1.msra.mxu0 0.0
    %193 = vmatprep.subr.mxu0 0.0
    %194 = vmatpush1.msra.mxu0 0.0
    %195 = vmatprep.subr.mxu0 0.0
    %196 = vmatpush1.msra.mxu0 0.0
    %197 = vmatprep.subr.mxu0 0.0
    %198 = vmatpush1.msra.mxu0 0.0
    %199 = vmatprep.subr.mxu0 0.0
    %200 = vmatpush1.msra.mxu0 0.0
    %201 = vmatprep.subr.mxu0 0.0
    %202 = vmatpush1.msra.mxu0 0.0
    %203 = vmatprep.subr.mxu0 0.0
    %204 = vmatpush1.msra.mxu0 0.0
    %205 = vmatprep.subr.mxu0 0.0
    %206 = vmatpush1.msra.mxu0 0.0
    %207 = vmatprep.subr.mxu0 0.0
    %208 = vmatpush1.msra.mxu0 0.0
    %209 = vmatprep.subr.mxu0 0.0
    %210 = vmatpush1.msra.mxu0 0.0
    %211 = vmatprep.subr.mxu0 0.0
    %212 = vmatpush1.msra.mxu0 0.0
    %213 = vmatprep.subr.mxu0 0.0
    %214 = vmatpush1.msra.mxu0 0.0
    %215 = vmatprep.subr.mxu0 0.0
    %216 = vmatpush1.msra.mxu0 0.0
    %217 = vmatprep.subr.mxu0 0.0
    %218 = vmatpush1.msra.mxu0 0.0
    %219 = vmatprep.subr.mxu0 0.0
    %220 = vmatpush1.msra.mxu0 0.0
    %221 = vmatprep.subr.mxu0 0.0
    %222 = vmatpush1.msra.mxu0 0.0
    %223 = vmatprep.subr.mxu0 0.0
    %224 = vmatpush1.msra.mxu0 0.0
    %225 = vmatprep.subr.mxu0 0.0
    %226 = vmatpush1.msra.mxu0 0.0
    %227 = vmatprep.subr.mxu0 0.0
    %228 = vmatpush1.msra.mxu0 0.0
    %229 = vmatprep.mubr.f32.mxu0 0.0
    %230 = vmatmul.mubr.f32.gmra.mrb[0].mxu0 %v142
    %v231 = vpop.f32.mrb[0].mxu0
    %v232 = vadd.f32 %v138, %v231
    %v233 = vpop.f32.mrb[0].mxu0
    %234 = vmatprep.mubr.f32.mxu0 0.0
    %235 = vmatmul.mubr.f32.gmra.mrb[0].mxu0 %v145
    %v236 = vpop.f32.mrb[0].mxu0
    %v237 = vadd.f32 %v138, %v236
    %v238 = vpop.f32.mrb[0].mxu0
    %239 = vmatprep.mubr.f32.mxu0 0.0
    %240 = vmatmul.mubr.f32.gmra.mrb[0].mxu0 %v148
    %v241 = vpop.f32.mrb[0].mxu0
    %v242 = vadd.f32 %v138, %v241
    %v243 = vpop.f32.mrb[0].mxu0
    %244 = vmatprep.mubr.f32.mxu0 0.0
    %245 = vmatmul.mubr.f32.gmra.mrb[0].mxu0 %v151
    %v246 = vpop.f32.mrb[0].mxu0
    %v247 = vadd.f32 %v138, %v246
    %v248 = vpop.f32.mrb[0].mxu0
    %249 = vmatprep.mubr.f32.mxu0 0.0
    %250 = vmatmul.mubr.f32.gmra.mrb[0].mxu0 %v154
    %v251 = vpop.f32.mrb[0].mxu0
    %v252 = vadd.f32 %v138, %v251
    %v253 = vpop.f32.mrb[0].mxu0
    %254 = vmatprep.mubr.f32.mxu0 0.0
    %255 = vmatmul.mubr.f32.gmra.mrb[0].mxu0 %v157
    %v256 = vpop.f32.mrb[0].mxu0
    %v257 = vadd.f32 %v138, %v256
    %v258 = vpop.f32.mrb[0].mxu0
    %259 = vmatprep.mubr.f32.mxu0 0.0
    %260 = vmatmul.mubr.f32.gmra.mrb[0].mxu0 %v160
    %v261 = vpop.f32.mrb[0].mxu0
    %v262 = vadd.f32 %v138, %v261
    %v263 = vpop.f32.mrb[0].mxu0
    %264 = vmatprep.mubr.f32.mxu0 0.0
    %265 = vmatmul.mubr.f32.gmra.mrb[0].mxu0 %v163
    %v266 = vpop.f32.mrb[0].mxu0
    %v267 = vadd.f32 %v138, %v266
    %v268 = vpop.f32.mrb[0].mxu0
    %269 = vdwg.mxu0
    %v270 = vld [vmem:[#allocation7] sm:$0xff]
    %v271 = vld [vmem:[#allocation7 + $0x8] sm:$0xff]
    %v272 = vld [vmem:[#allocation7 + $0x10] sm:$0xff]
    %v273 = vld [vmem:[#allocation7 + $0x18] sm:$0xff]
    %v274 = vld [vmem:[%s1] sm:$0xff]
    %v275 = vld [vmem:[#allocation2] sm:$0xff]
    %vm276 = vcmask 261120
    %v278 = vsel %vm276, %v274, 0
    %280 = vmatprep.subr.mxu0 0.0
    %281 = vmatpush1.msra.mxu0 %v270
    %282 = vmatprep.subr.mxu0 0.0
    %283 = vmatpush1.msra.mxu0 %v271
    %284 = vmatprep.subr.mxu0 0.0
    %285 = vmatpush1.msra.mxu0 %v272
    %286 = vmatprep.subr.mxu0 0.0
    %287 = vmatpush1.msra.mxu0 %v273
    %288 = vmatprep.subr.mxu0 0.0
    %289 = vmatpush1.msra.mxu0 0.0
    %290 = vmatprep.subr.mxu0 0.0
    %291 = vmatpush1.msra.mxu0 0.0
    %292 = vmatprep.subr.mxu0 0.0
    %293 = vmatpush1.msra.mxu0 0.0
    %294 = vmatprep.subr.mxu0 0.0
    %295 = vmatpush1.msra.mxu0 0.0
    %296 = vmatprep.subr.mxu0 0.0
    %297 = vmatpush1.msra.mxu0 0.0
    %298 = vmatprep.subr.mxu0 0.0
    %299 = vmatpush1.msra.mxu0 0.0
    %300 = vmatprep.subr.mxu0 0.0
    %301 = vmatpush1.msra.mxu0 0.0
    %302 = vmatprep.subr.mxu0 0.0
    %303 = vmatpush1.msra.mxu0 0.0
    %304 = vmatprep.subr.mxu0 0.0
    %305 = vmatpush1.msra.mxu0 0.0
    %306 = vmatprep.subr.mxu0 0.0
    %307 = vmatpush1.msra.mxu0 0.0
    %308 = vmatprep.subr.mxu0 0.0
    %309 = vmatpush1.msra.mxu0 0.0
    %310 = vmatprep.subr.mxu0 0.0
    %311 = vmatpush1.msra.mxu0 0.0
    %312 = vmatprep.subr.mxu0 0.0
    %313 = vmatpush1.msra.mxu0 0.0
    %314 = vmatprep.subr.mxu0 0.0
    %315 = vmatpush1.msra.mxu0 0.0
    %316 = vmatprep.subr.mxu0 0.0
    %317 = vmatpush1.msra.mxu0 0.0
    %318 = vmatprep.subr.mxu0 0.0
    %319 = vmatpush1.msra.mxu0 0.0
    %320 = vmatprep.subr.mxu0 0.0
    %321 = vmatpush1.msra.mxu0 0.0
    %322 = vmatprep.subr.mxu0 0.0
    %323 = vmatpush1.msra.mxu0 0.0
    %324 = vmatprep.subr.mxu0 0.0
    %325 = vmatpush1.msra.mxu0 0.0
    %326 = vmatprep.subr.mxu0 0.0
    %327 = vmatpush1.msra.mxu0 0.0
    %328 = vmatprep.subr.mxu0 0.0
    %329 = vmatpush1.msra.mxu0 0.0
    %330 = vmatprep.subr.mxu0 0.0
    %331 = vmatpush1.msra.mxu0 0.0
    %332 = vmatprep.subr.mxu0 0.0
    %333 = vmatpush1.msra.mxu0 0.0
    %334 = vmatprep.subr.mxu0 0.0
    %335 = vmatpush1.msra.mxu0 0.0
    %336 = vmatprep.subr.mxu0 0.0
    %337 = vmatpush1.msra.mxu0 0.0
    %338 = vmatprep.subr.mxu0 0.0
    %339 = vmatpush1.msra.mxu0 0.0
    %340 = vmatprep.subr.mxu0 0.0
    %341 = vmatpush1.msra.mxu0 0.0
    %342 = vmatprep.subr.mxu0 0.0
    %343 = vmatpush1.msra.mxu0 0.0
    %344 = vmatprep.mubr.f32.mxu0 0.0
    %345 = vmatmul.mubr.f32.gmra.mrb[0].mxu0 %v278
    %v346 = vpop.f32.mrb[0].mxu0
    %v347 = vadd.f32 0.0, %v346
    %v348 = vpop.f32.mrb[0].mxu0
    %349 = vdwg.mxu0
    %v350 = vadd.f32 %v232, %v347
    %v351 = vxor.u32 %v350, 2147483648
    %v352 = vmul.f32 %v351, 1.442695
    %v353 = vpow.pop %v352
    %v354 = vadd.f32 %v353, 1.0
    %v355 = vrcp.pop %v354
    %v356 = vmul.f32 1.0, %v355
    %v357 = vtanh.pop %v350
    %359 = vrot.lane.b32.xlu0 %v275, 32
    %v360 = vpop.permute.xlu0 %359
    %v362 = vmul.f32 %v356, %v360
    %364 = vrot.lane.b32.xlu0 %v357, 64
    %v365 = vpop.permute.xlu0 %364
    %v367 = vmul.f32 %v356, %v365
    %369 = vrot.lane.b32.xlu0 %v367, 32
    %v370 = vpop.permute.xlu0 %369
    %v372 = vadd.f32 %v362, %v370
    %v373 = vtanh.pop %v372
    %375 = vrot.lane.b32.xlu0 %v373, 64
    %v376 = vpop.permute.xlu0 %375
    %v378 = vmul.f32 %v356, %v376
    %380 = vrot.lane.b32.xlu0 %v378, 32
    %v381 = vpop.permute.xlu0 %380
    %v382 = vsel %vm276, %v381, 0
    %384 = vmatprep.subr.mxu0 0.0
    %385 = vmatpush1.msra.mxu0 %v270
    %386 = vmatprep.subr.mxu0 0.0
    %387 = vmatpush1.msra.mxu0 %v271
    %388 = vmatprep.subr.mxu0 0.0
    %389 = vmatpush1.msra.mxu0 %v272
    %390 = vmatprep.subr.mxu0 0.0
    %391 = vmatpush1.msra.mxu0 %v273
    %392 = vmatprep.subr.mxu0 0.0
    %393 = vmatpush1.msra.mxu0 0.0
    %394 = vmatprep.subr.mxu0 0.0
    %395 = vmatpush1.msra.mxu0 0.0
    %396 = vmatprep.subr.mxu0 0.0
    %397 = vmatpush1.msra.mxu0 0.0
    %398 = vmatprep.subr.mxu0 0.0
    %399 = vmatpush1.msra.mxu0 0.0
    %400 = vmatprep.subr.mxu0 0.0
    %401 = vmatpush1.msra.mxu0 0.0
    %402 = vmatprep.subr.mxu0 0.0
    %403 = vmatpush1.msra.mxu0 0.0
    %404 = vmatprep.subr.mxu0 0.0
    %405 = vmatpush1.msra.mxu0 0.0
    %406 = vmatprep.subr.mxu0 0.0
    %407 = vmatpush1.msra.mxu0 0.0
    %408 = vmatprep.subr.mxu0 0.0
    %409 = vmatpush1.msra.mxu0 0.0
    %410 = vmatprep.subr.mxu0 0.0
    %411 = vmatpush1.msra.mxu0 0.0
    %412 = vmatprep.subr.mxu0 0.0
    %413 = vmatpush1.msra.mxu0 0.0
    %414 = vmatprep.subr.mxu0 0.0
    %415 = vmatpush1.msra.mxu0 0.0
    %416 = vmatprep.subr.mxu0 0.0
    %417 = vmatpush1.msra.mxu0 0.0
    %418 = vmatprep.subr.mxu0 0.0
    %419 = vmatpush1.msra.mxu0 0.0
    %420 = vmatprep.subr.mxu0 0.0
    %421 = vmatpush1.msra.mxu0 0.0
    %422 = vmatprep.subr.mxu0 0.0
    %423 = vmatpush1.msra.mxu0 0.0
    %424 = vmatprep.subr.mxu0 0.0
    %425 = vmatpush1.msra.mxu0 0.0
    %426 = vmatprep.subr.mxu0 0.0
    %427 = vmatpush1.msra.mxu0 0.0
    %428 = vmatprep.subr.mxu0 0.0
    %429 = vmatpush1.msra.mxu0 0.0
    %430 = vmatprep.subr.mxu0 0.0
    %431 = vmatpush1.msra.mxu0 0.0
    %432 = vmatprep.subr.mxu0 0.0
    %433 = vmatpush1.msra.mxu0 0.0
    %434 = vmatprep.subr.mxu0 0.0
    %435 = vmatpush1.msra.mxu0 0.0
    %436 = vmatprep.subr.mxu0 0.0
    %437 = vmatpush1.msra.mxu0 0.0
    %438 = vmatprep.subr.mxu0 0.0
    %439 = vmatpush1.msra.mxu0 0.0
    %440 = vmatprep.subr.mxu0 0.0
    %441 = vmatpush1.msra.mxu0 0.0
    %442 = vmatprep.subr.mxu0 0.0
    %443 = vmatpush1.msra.mxu0 0.0
    %444 = vmatprep.subr.mxu0 0.0
    %445 = vmatpush1.msra.mxu0 0.0
    %446 = vmatprep.subr.mxu0 0.0
    %447 = vmatpush1.msra.mxu0 0.0
    %448 = vmatprep.mubr.f32.mxu0 0.0
    %449 = vmatmul.mubr.f32.gmra.mrb[0].mxu0 %v382
    %v450 = vpop.f32.mrb[0].mxu0
    %v451 = vadd.f32 0.0, %v450
    %v452 = vpop.f32.mrb[0].mxu0
    %453 = vdwg.mxu0
    %v454 = vadd.f32 %v237, %v451
    %v455 = vxor.u32 %v454, 2147483648
    %v456 = vmul.f32 %v455, 1.442695
    %v457 = vpow.pop %v456
    %v458 = vadd.f32 %v457, 1.0
    %v459 = vrcp.pop %v458
    %v460 = vmul.f32 1.0, %v459
    %v461 = vtanh.pop %v454
    %v462 = vmul.f32 %v460, %v372
    %464 = vrot.lane.b32.xlu0 %v461, 64
    %v465 = vpop.permute.xlu0 %464
    %v467 = vmul.f32 %v460, %v465
    %469 = vrot.lane.b32.xlu0 %v467, 32
    %v470 = vpop.permute.xlu0 %469
    %v472 = vadd.f32 %v462, %v470
    %v473 = vtanh.pop %v472
    %475 = vrot.lane.b32.xlu0 %v473, 64
    %v476 = vpop.permute.xlu0 %475
    %v478 = vmul.f32 %v460, %v476
    %480 = vrot.lane.b32.xlu0 %v478, 32
    %v481 = vpop.permute.xlu0 %480
    %v482 = vsel %vm276, %v481, 0
    %484 = vmatprep.subr.mxu0 0.0
    %485 = vmatpush1.msra.mxu0 %v270
    %486 = vmatprep.subr.mxu0 0.0
    %487 = vmatpush1.msra.mxu0 %v271
    %488 = vmatprep.subr.mxu0 0.0
    %489 = vmatpush1.msra.mxu0 %v272
    %490 = vmatprep.subr.mxu0 0.0
    %491 = vmatpush1.msra.mxu0 %v273
    %492 = vmatprep.subr.mxu0 0.0
    %493 = vmatpush1.msra.mxu0 0.0
    %494 = vmatprep.subr.mxu0 0.0
    %495 = vmatpush1.msra.mxu0 0.0
    %496 = vmatprep.subr.mxu0 0.0
    %497 = vmatpush1.msra.mxu0 0.0
    %498 = vmatprep.subr.mxu0 0.0
    %499 = vmatpush1.msra.mxu0 0.0
    %500 = vmatprep.subr.mxu0 0.0
    %501 = vmatpush1.msra.mxu0 0.0
    %502 = vmatprep.subr.mxu0 0.0
    %503 = vmatpush1.msra.mxu0 0.0
    %504 = vmatprep.subr.mxu0 0.0
    %505 = vmatpush1.msra.mxu0 0.0
    %506 = vmatprep.subr.mxu0 0.0
    %507 = vmatpush1.msra.mxu0 0.0
    %508 = vmatprep.subr.mxu0 0.0
    %509 = vmatpush1.msra.mxu0 0.0
    %510 = vmatprep.subr.mxu0 0.0
    %511 = vmatpush1.msra.mxu0 0.0
    %512 = vmatprep.subr.mxu0 0.0
    %513 = vmatpush1.msra.mxu0 0.0
    %514 = vmatprep.subr.mxu0 0.0
    %515 = vmatpush1.msra.mxu0 0.0
    %516 = vmatprep.subr.mxu0 0.0
    %517 = vmatpush1.msra.mxu0 0.0
    %518 = vmatprep.subr.mxu0 0.0
    %519 = vmatpush1.msra.mxu0 0.0
    %520 = vmatprep.subr.mxu0 0.0
    %521 = vmatpush1.msra.mxu0 0.0
    %522 = vmatprep.subr.mxu0 0.0
    %523 = vmatpush1.msra.mxu0 0.0
    %524 = vmatprep.subr.mxu0 0.0
    %525 = vmatpush1.msra.mxu0 0.0
    %526 = vmatprep.subr.mxu0 0.0
    %527 = vmatpush1.msra.mxu0 0.0
    %528 = vmatprep.subr.mxu0 0.0
    %529 = vmatpush1.msra.mxu0 0.0
    %530 = vmatprep.subr.mxu0 0.0
    %531 = vmatpush1.msra.mxu0 0.0
    %532 = vmatprep.subr.mxu0 0.0
    %533 = vmatpush1.msra.mxu0 0.0
    %534 = vmatprep.subr.mxu0 0.0
    %535 = vmatpush1.msra.mxu0 0.0
    %536 = vmatprep.subr.mxu0 0.0
    %537 = vmatpush1.msra.mxu0 0.0
    %538 = vmatprep.subr.mxu0 0.0
    %539 = vmatpush1.msra.mxu0 0.0
    %540 = vmatprep.subr.mxu0 0.0
    %541 = vmatpush1.msra.mxu0 0.0
    %542 = vmatprep.subr.mxu0 0.0
    %543 = vmatpush1.msra.mxu0 0.0
    %544 = vmatprep.subr.mxu0 0.0
    %545 = vmatpush1.msra.mxu0 0.0
    %546 = vmatprep.subr.mxu0 0.0
    %547 = vmatpush1.msra.mxu0 0.0
    %548 = vmatprep.mubr.f32.mxu0 0.0
    %549 = vmatmul.mubr.f32.gmra.mrb[0].mxu0 %v482
    %v550 = vpop.f32.mrb[0].mxu0
    %v551 = vadd.f32 0.0, %v550
    %v552 = vpop.f32.mrb[0].mxu0
    %553 = vdwg.mxu0
    %v554 = vadd.f32 %v242, %v551
    %v555 = vxor.u32 %v554, 2147483648
    %v556 = vmul.f32 %v555, 1.442695
    %v557 = vpow.pop %v556
    %v558 = vadd.f32 %v557, 1.0
    %v559 = vrcp.pop %v558
    %v560 = vmul.f32 1.0, %v559
    %v561 = vtanh.pop %v554
    %v562 = vmul.f32 %v560, %v472
    %564 = vrot.lane.b32.xlu0 %v561, 64
    %v565 = vpop.permute.xlu0 %564
    %v567 = vmul.f32 %v560, %v565
    %569 = vrot.lane.b32.xlu0 %v567, 32
    %v570 = vpop.permute.xlu0 %569
    %v572 = vadd.f32 %v562, %v570
    %v573 = vtanh.pop %v572
    %575 = vrot.lane.b32.xlu0 %v573, 64
    %v576 = vpop.permute.xlu0 %575
    %v578 = vmul.f32 %v560, %v576
    %580 = vrot.lane.b32.xlu0 %v578, 32
    %v581 = vpop.permute.xlu0 %580
    %v582 = vsel %vm276, %v581, 0
    %584 = vmatprep.subr.mxu0 0.0
    %585 = vmatpush1.msra.mxu0 %v270
    %586 = vmatprep.subr.mxu0 0.0
    %587 = vmatpush1.msra.mxu0 %v271
    %588 = vmatprep.subr.mxu0 0.0
    %589 = vmatpush1.msra.mxu0 %v272
    %590 = vmatprep.subr.mxu0 0.0
    %591 = vmatpush1.msra.mxu0 %v273
    %592 = vmatprep.subr.mxu0 0.0
    %593 = vmatpush1.msra.mxu0 0.0
    %594 = vmatprep.subr.mxu0 0.0
    %595 = vmatpush1.msra.mxu0 0.0
    %596 = vmatprep.subr.mxu0 0.0
    %597 = vmatpush1.msra.mxu0 0.0
    %598 = vmatprep.subr.mxu0 0.0
    %599 = vmatpush1.msra.mxu0 0.0
    %600 = vmatprep.subr.mxu0 0.0
    %601 = vmatpush1.msra.mxu0 0.0
    %602 = vmatprep.subr.mxu0 0.0
    %603 = vmatpush1.msra.mxu0 0.0
    %604 = vmatprep.subr.mxu0 0.0
    %605 = vmatpush1.msra.mxu0 0.0
    %606 = vmatprep.subr.mxu0 0.0
    %607 = vmatpush1.msra.mxu0 0.0
    %608 = vmatprep.subr.mxu0 0.0
    %609 = vmatpush1.msra.mxu0 0.0
    %610 = vmatprep.subr.mxu0 0.0
    %611 = vmatpush1.msra.mxu0 0.0
    %612 = vmatprep.subr.mxu0 0.0
    %613 = vmatpush1.msra.mxu0 0.0
    %614 = vmatprep.subr.mxu0 0.0
    %615 = vmatpush1.msra.mxu0 0.0
    %616 = vmatprep.subr.mxu0 0.0
    %617 = vmatpush1.msra.mxu0 0.0
    %618 = vmatprep.subr.mxu0 0.0
    %619 = vmatpush1.msra.mxu0 0.0
    %620 = vmatprep.subr.mxu0 0.0
    %621 = vmatpush1.msra.mxu0 0.0
    %622 = vmatprep.subr.mxu0 0.0
    %623 = vmatpush1.msra.mxu0 0.0
    %624 = vmatprep.subr.mxu0 0.0
    %625 = vmatpush1.msra.mxu0 0.0
    %626 = vmatprep.subr.mxu0 0.0
    %627 = vmatpush1.msra.mxu0 0.0
    %628 = vmatprep.subr.mxu0 0.0
    %629 = vmatpush1.msra.mxu0 0.0
    %630 = vmatprep.subr.mxu0 0.0
    %631 = vmatpush1.msra.mxu0 0.0
    %632 = vmatprep.subr.mxu0 0.0
    %633 = vmatpush1.msra.mxu0 0.0
    %634 = vmatprep.subr.mxu0 0.0
    %635 = vmatpush1.msra.mxu0 0.0
    %636 = vmatprep.subr.mxu0 0.0
    %637 = vmatpush1.msra.mxu0 0.0
    %638 = vmatprep.subr.mxu0 0.0
    %639 = vmatpush1.msra.mxu0 0.0
    %640 = vmatprep.subr.mxu0 0.0
    %641 = vmatpush1.msra.mxu0 0.0
    %642 = vmatprep.subr.mxu0 0.0
    %643 = vmatpush1.msra.mxu0 0.0
    %644 = vmatprep.subr.mxu0 0.0
    %645 = vmatpush1.msra.mxu0 0.0
    %646 = vmatprep.subr.mxu0 0.0
    %647 = vmatpush1.msra.mxu0 0.0
    %648 = vmatprep.mubr.f32.mxu0 0.0
    %649 = vmatmul.mubr.f32.gmra.mrb[0].mxu0 %v582
    %v650 = vpop.f32.mrb[0].mxu0
    %v651 = vadd.f32 0.0, %v650
    %v652 = vpop.f32.mrb[0].mxu0
    %653 = vdwg.mxu0
    %v654 = vadd.f32 %v247, %v651
    %v655 = vxor.u32 %v654, 2147483648
    %v656 = vmul.f32 %v655, 1.442695
    %v657 = vpow.pop %v656
    %v658 = vadd.f32 %v657, 1.0
    %v659 = vrcp.pop %v658
    %v660 = vmul.f32 1.0, %v659
    %v661 = vtanh.pop %v654
    %v662 = vmul.f32 %v660, %v572
    %664 = vrot.lane.b32.xlu0 %v661, 64
    %v665 = vpop.permute.xlu0 %664
    %v667 = vmul.f32 %v660, %v665
    %669 = vrot.lane.b32.xlu0 %v667, 32
    %v670 = vpop.permute.xlu0 %669
    %v672 = vadd.f32 %v662, %v670
    %v673 = vtanh.pop %v672
    %675 = vrot.lane.b32.xlu0 %v673, 64
    %v676 = vpop.permute.xlu0 %675
    %v678 = vmul.f32 %v660, %v676
    %680 = vrot.lane.b32.xlu0 %v678, 32
    %v681 = vpop.permute.xlu0 %680
    %v682 = vsel %vm276, %v681, 0
    %684 = vmatprep.subr.mxu0 0.0
    %685 = vmatpush1.msra.mxu0 %v270
    %686 = vmatprep.subr.mxu0 0.0
    %687 = vmatpush1.msra.mxu0 %v271
    %688 = vmatprep.subr.mxu0 0.0
    %689 = vmatpush1.msra.mxu0 %v272
    %690 = vmatprep.subr.mxu0 0.0
    %691 = vmatpush1.msra.mxu0 %v273
    %692 = vmatprep.subr.mxu0 0.0
    %693 = vmatpush1.msra.mxu0 0.0
    %694 = vmatprep.subr.mxu0 0.0
    %695 = vmatpush1.msra.mxu0 0.0
    %696 = vmatprep.subr.mxu0 0.0
    %697 = vmatpush1.msra.mxu0 0.0
    %698 = vmatprep.subr.mxu0 0.0
    %699 = vmatpush1.msra.mxu0 0.0
    %700 = vmatprep.subr.mxu0 0.0
    %701 = vmatpush1.msra.mxu0 0.0
    %702 = vmatprep.subr.mxu0 0.0
    %703 = vmatpush1.msra.mxu0 0.0
    %704 = vmatprep.subr.mxu0 0.0
    %705 = vmatpush1.msra.mxu0 0.0
    %706 = vmatprep.subr.mxu0 0.0
    %707 = vmatpush1.msra.mxu0 0.0
    %708 = vmatprep.subr.mxu0 0.0
    %709 = vmatpush1.msra.mxu0 0.0
    %710 = vmatprep.subr.mxu0 0.0
    %711 = vmatpush1.msra.mxu0 0.0
    %712 = vmatprep.subr.mxu0 0.0
    %713 = vmatpush1.msra.mxu0 0.0
    %714 = vmatprep.subr.mxu0 0.0
    %715 = vmatpush1.msra.mxu0 0.0
    %716 = vmatprep.subr.mxu0 0.0
    %717 = vmatpush1.msra.mxu0 0.0
    %718 = vmatprep.subr.mxu0 0.0
    %719 = vmatpush1.msra.mxu0 0.0
    %720 = vmatprep.subr.mxu0 0.0
    %721 = vmatpush1.msra.mxu0 0.0
    %722 = vmatprep.subr.mxu0 0.0
    %723 = vmatpush1.msra.mxu0 0.0
    %724 = vmatprep.subr.mxu0 0.0
    %725 = vmatpush1.msra.mxu0 0.0
    %726 = vmatprep.subr.mxu0 0.0
    %727 = vmatpush1.msra.mxu0 0.0
    %728 = vmatprep.subr.mxu0 0.0
    %729 = vmatpush1.msra.mxu0 0.0
    %730 = vmatprep.subr.mxu0 0.0
    %731 = vmatpush1.msra.mxu0 0.0
    %732 = vmatprep.subr.mxu0 0.0
    %733 = vmatpush1.msra.mxu0 0.0
    %734 = vmatprep.subr.mxu0 0.0
    %735 = vmatpush1.msra.mxu0 0.0
    %736 = vmatprep.subr.mxu0 0.0
    %737 = vmatpush1.msra.mxu0 0.0
    %738 = vmatprep.subr.mxu0 0.0
    %739 = vmatpush1.msra.mxu0 0.0
    %740 = vmatprep.subr.mxu0 0.0
    %741 = vmatpush1.msra.mxu0 0.0
    %742 = vmatprep.subr.mxu0 0.0
    %743 = vmatpush1.msra.mxu0 0.0
    %744 = vmatprep.subr.mxu0 0.0
    %745 = vmatpush1.msra.mxu0 0.0
    %746 = vmatprep.subr.mxu0 0.0
    %747 = vmatpush1.msra.mxu0 0.0
    %748 = vmatprep.mubr.f32.mxu0 0.0
    %749 = vmatmul.mubr.f32.gmra.mrb[0].mxu0 %v682
    %v750 = vpop.f32.mrb[0].mxu0
    %v751 = vadd.f32 0.0, %v750
    %v752 = vpop.f32.mrb[0].mxu0
    %753 = vdwg.mxu0
    %v754 = vadd.f32 %v252, %v751
    %v755 = vxor.u32 %v754, 2147483648
    %v756 = vmul.f32 %v755, 1.442695
    %v757 = vpow.pop %v756
    %v758 = vadd.f32 %v757, 1.0
    %v759 = vrcp.pop %v758
    %v760 = vmul.f32 1.0, %v759
    %v761 = vtanh.pop %v754
    %v762 = vmul.f32 %v760, %v672
    %764 = vrot.lane.b32.xlu0 %v761, 64
    %v765 = vpop.permute.xlu0 %764
    %v767 = vmul.f32 %v760, %v765
    %769 = vrot.lane.b32.xlu0 %v767, 32
    %v770 = vpop.permute.xlu0 %769
    %v772 = vadd.f32 %v762, %v770
    %v773 = vtanh.pop %v772
    %775 = vrot.lane.b32.xlu0 %v773, 64
    %v776 = vpop.permute.xlu0 %775
    %v778 = vmul.f32 %v760, %v776
    %780 = vrot.lane.b32.xlu0 %v778, 32
    %v781 = vpop.permute.xlu0 %780
    %v782 = vsel %vm276, %v781, 0
    %784 = vmatprep.subr.mxu0 0.0
    %785 = vmatpush1.msra.mxu0 %v270
    %786 = vmatprep.subr.mxu0 0.0
    %787 = vmatpush1.msra.mxu0 %v271
    %788 = vmatprep.subr.mxu0 0.0
    %789 = vmatpush1.msra.mxu0 %v272
    %790 = vmatprep.subr.mxu0 0.0
    %791 = vmatpush1.msra.mxu0 %v273
    %792 = vmatprep.subr.mxu0 0.0
    %793 = vmatpush1.msra.mxu0 0.0
    %794 = vmatprep.subr.mxu0 0.0
    %795 = vmatpush1.msra.mxu0 0.0
    %796 = vmatprep.subr.mxu0 0.0
    %797 = vmatpush1.msra.mxu0 0.0
    %798 = vmatprep.subr.mxu0 0.0
    %799 = vmatpush1.msra.mxu0 0.0
    %800 = vmatprep.subr.mxu0 0.0
    %801 = vmatpush1.msra.mxu0 0.0
    %802 = vmatprep.subr.mxu0 0.0
    %803 = vmatpush1.msra.mxu0 0.0
    %804 = vmatprep.subr.mxu0 0.0
    %805 = vmatpush1.msra.mxu0 0.0
    %806 = vmatprep.subr.mxu0 0.0
    %807 = vmatpush1.msra.mxu0 0.0
    %808 = vmatprep.subr.mxu0 0.0
    %809 = vmatpush1.msra.mxu0 0.0
    %810 = vmatprep.subr.mxu0 0.0
    %811 = vmatpush1.msra.mxu0 0.0
    %812 = vmatprep.subr.mxu0 0.0
    %813 = vmatpush1.msra.mxu0 0.0
    %814 = vmatprep.subr.mxu0 0.0
    %815 = vmatpush1.msra.mxu0 0.0
    %816 = vmatprep.subr.mxu0 0.0
    %817 = vmatpush1.msra.mxu0 0.0
    %818 = vmatprep.subr.mxu0 0.0
    %819 = vmatpush1.msra.mxu0 0.0
    %820 = vmatprep.subr.mxu0 0.0
    %821 = vmatpush1.msra.mxu0 0.0
    %822 = vmatprep.subr.mxu0 0.0
    %823 = vmatpush1.msra.mxu0 0.0
    %824 = vmatprep.subr.mxu0 0.0
    %825 = vmatpush1.msra.mxu0 0.0
    %826 = vmatprep.subr.mxu0 0.0
    %827 = vmatpush1.msra.mxu0 0.0
    %828 = vmatprep.subr.mxu0 0.0
    %829 = vmatpush1.msra.mxu0 0.0
    %830 = vmatprep.subr.mxu0 0.0
    %831 = vmatpush1.msra.mxu0 0.0
    %832 = vmatprep.subr.mxu0 0.0
    %833 = vmatpush1.msra.mxu0 0.0
    %834 = vmatprep.subr.mxu0 0.0
    %835 = vmatpush1.msra.mxu0 0.0
    %836 = vmatprep.subr.mxu0 0.0
    %837 = vmatpush1.msra.mxu0 0.0
    %838 = vmatprep.subr.mxu0 0.0
    %839 = vmatpush1.msra.mxu0 0.0
    %840 = vmatprep.subr.mxu0 0.0
    %841 = vmatpush1.msra.mxu0 0.0
    %842 = vmatprep.subr.mxu0 0.0
    %843 = vmatpush1.msra.mxu0 0.0
    %844 = vmatprep.subr.mxu0 0.0
    %845 = vmatpush1.msra.mxu0 0.0
    %846 = vmatprep.subr.mxu0 0.0
    %847 = vmatpush1.msra.mxu0 0.0
    %848 = vmatprep.mubr.f32.mxu0 0.0
    %849 = vmatmul.mubr.f32.gmra.mrb[0].mxu0 %v782
    %v850 = vpop.f32.mrb[0].mxu0
    %v851 = vadd.f32 0.0, %v850
    %v852 = vpop.f32.mrb[0].mxu0
    %853 = vdwg.mxu0
    %v854 = vadd.f32 %v257, %v851
    %v855 = vxor.u32 %v854, 2147483648
    %v856 = vmul.f32 %v855, 1.442695
    %v857 = vpow.pop %v856
    %v858 = vadd.f32 %v857, 1.0
    %v859 = vrcp.pop %v858
    %v860 = vmul.f32 1.0, %v859
    %v861 = vtanh.pop %v854
    %v862 = vmul.f32 %v860, %v772
    %864 = vrot.lane.b32.xlu0 %v861, 64
    %v865 = vpop.permute.xlu0 %864
    %v867 = vmul.f32 %v860, %v865
    %869 = vrot.lane.b32.xlu0 %v867, 32
    %v870 = vpop.permute.xlu0 %869
    %v872 = vadd.f32 %v862, %v870
    %v873 = vtanh.pop %v872
    %875 = vrot.lane.b32.xlu0 %v873, 64
    %v876 = vpop.permute.xlu0 %875
    %v878 = vmul.f32 %v860, %v876
    %880 = vrot.lane.b32.xlu0 %v878, 32
    %v881 = vpop.permute.xlu0 %880
    %v882 = vsel %vm276, %v881, 0
    %884 = vmatprep.subr.mxu0 0.0
    %885 = vmatpush1.msra.mxu0 %v270
    %886 = vmatprep.subr.mxu0 0.0
    %887 = vmatpush1.msra.mxu0 %v271
    %888 = vmatprep.subr.mxu0 0.0
    %889 = vmatpush1.msra.mxu0 %v272
    %890 = vmatprep.subr.mxu0 0.0
    %891 = vmatpush1.msra.mxu0 %v273
    %892 = vmatprep.subr.mxu0 0.0
    %893 = vmatpush1.msra.mxu0 0.0
    %894 = vmatprep.subr.mxu0 0.0
    %895 = vmatpush1.msra.mxu0 0.0
    %896 = vmatprep.subr.mxu0 0.0
    %897 = vmatpush1.msra.mxu0 0.0
    %898 = vmatprep.subr.mxu0 0.0
    %899 = vmatpush1.msra.mxu0 0.0
    %900 = vmatprep.subr.mxu0 0.0
    %901 = vmatpush1.msra.mxu0 0.0
    %902 = vmatprep.subr.mxu0 0.0
    %903 = vmatpush1.msra.mxu0 0.0
    %904 = vmatprep.subr.mxu0 0.0
    %905 = vmatpush1.msra.mxu0 0.0
    %906 = vmatprep.subr.mxu0 0.0
    %907 = vmatpush1.msra.mxu0 0.0
    %908 = vmatprep.subr.mxu0 0.0
    %909 = vmatpush1.msra.mxu0 0.0
    %910 = vmatprep.subr.mxu0 0.0
    %911 = vmatpush1.msra.mxu0 0.0
    %912 = vmatprep.subr.mxu0 0.0
    %913 = vmatpush1.msra.mxu0 0.0
    %914 = vmatprep.subr.mxu0 0.0
    %915 = vmatpush1.msra.mxu0 0.0
    %916 = vmatprep.subr.mxu0 0.0
    %917 = vmatpush1.msra.mxu0 0.0
    %918 = vmatprep.subr.mxu0 0.0
    %919 = vmatpush1.msra.mxu0 0.0
    %920 = vmatprep.subr.mxu0 0.0
    %921 = vmatpush1.msra.mxu0 0.0
    %922 = vmatprep.subr.mxu0 0.0
    %923 = vmatpush1.msra.mxu0 0.0
    %924 = vmatprep.subr.mxu0 0.0
    %925 = vmatpush1.msra.mxu0 0.0
    %926 = vmatprep.subr.mxu0 0.0
    %927 = vmatpush1.msra.mxu0 0.0
    %928 = vmatprep.subr.mxu0 0.0
    %929 = vmatpush1.msra.mxu0 0.0
    %930 = vmatprep.subr.mxu0 0.0
    %931 = vmatpush1.msra.mxu0 0.0
    %932 = vmatprep.subr.mxu0 0.0
    %933 = vmatpush1.msra.mxu0 0.0
    %934 = vmatprep.subr.mxu0 0.0
    %935 = vmatpush1.msra.mxu0 0.0
    %936 = vmatprep.subr.mxu0 0.0
    %937 = vmatpush1.msra.mxu0 0.0
    %938 = vmatprep.subr.mxu0 0.0
    %939 = vmatpush1.msra.mxu0 0.0
    %940 = vmatprep.subr.mxu0 0.0
    %941 = vmatpush1.msra.mxu0 0.0
    %942 = vmatprep.subr.mxu0 0.0
    %943 = vmatpush1.msra.mxu0 0.0
    %944 = vmatprep.subr.mxu0 0.0
    %945 = vmatpush1.msra.mxu0 0.0
    %946 = vmatprep.subr.mxu0 0.0
    %947 = vmatpush1.msra.mxu0 0.0
    %948 = vmatprep.mubr.f32.mxu0 0.0
    %949 = vmatmul.mubr.f32.gmra.mrb[0].mxu0 %v882
    %v950 = vpop.f32.mrb[0].mxu0
    %v951 = vadd.f32 0.0, %v950
    %v952 = vpop.f32.mrb[0].mxu0
    %953 = vdwg.mxu0
    %v954 = vadd.f32 %v262, %v951
    %v955 = vxor.u32 %v954, 2147483648
    %v956 = vmul.f32 %v955, 1.442695
    %v957 = vpow.pop %v956
    %v958 = vadd.f32 %v957, 1.0
    %v959 = vrcp.pop %v958
    %v960 = vmul.f32 1.0, %v959
    %v961 = vtanh.pop %v954
    %v962 = vmul.f32 %v960, %v872
    %964 = vrot.lane.b32.xlu0 %v961, 64
    %v965 = vpop.permute.xlu0 %964
    %v967 = vmul.f32 %v960, %v965
    %969 = vrot.lane.b32.xlu0 %v967, 32
    %v970 = vpop.permute.xlu0 %969
    %v972 = vadd.f32 %v962, %v970
    %v973 = vtanh.pop %v972
    %975 = vrot.lane.b32.xlu0 %v973, 64
    %v976 = vpop.permute.xlu0 %975
    %v978 = vmul.f32 %v960, %v976
    %980 = vrot.lane.b32.xlu0 %v978, 32
    %v981 = vpop.permute.xlu0 %980
    %v982 = vsel %vm276, %v981, 0
    %984 = vmatprep.subr.mxu0 0.0
    %985 = vmatpush1.msra.mxu0 %v270
    %986 = vmatprep.subr.mxu0 0.0
    %987 = vmatpush1.msra.mxu0 %v271
    %988 = vmatprep.subr.mxu0 0.0
    %989 = vmatpush1.msra.mxu0 %v272
    %990 = vmatprep.subr.mxu0 0.0
    %991 = vmatpush1.msra.mxu0 %v273
    %992 = vmatprep.subr.mxu0 0.0
    %993 = vmatpush1.msra.mxu0 0.0
    %994 = vmatprep.subr.mxu0 0.0
    %995 = vmatpush1.msra.mxu0 0.0
    %996 = vmatprep.subr.mxu0 0.0
    %997 = vmatpush1.msra.mxu0 0.0
    %998 = vmatprep.subr.mxu0 0.0
    %999 = vmatpush1.msra.mxu0 0.0
    %1000 = vmatprep.subr.mxu0 0.0
    %1001 = vmatpush1.msra.mxu0 0.0
    %1002 = vmatprep.subr.mxu0 0.0
    %1003 = vmatpush1.msra.mxu0 0.0
    %1004 = vmatprep.subr.mxu0 0.0
    %1005 = vmatpush1.msra.mxu0 0.0
    %1006 = vmatprep.subr.mxu0 0.0
    %1007 = vmatpush1.msra.mxu0 0.0
    %1008 = vmatprep.subr.mxu0 0.0
    %1009 = vmatpush1.msra.mxu0 0.0
    %1010 = vmatprep.subr.mxu0 0.0
    %1011 = vmatpush1.msra.mxu0 0.0
    %1012 = vmatprep.subr.mxu0 0.0
    %1013 = vmatpush1.msra.mxu0 0.0
    %1014 = vmatprep.subr.mxu0 0.0
    %1015 = vmatpush1.msra.mxu0 0.0
    %1016 = vmatprep.subr.mxu0 0.0
    %1017 = vmatpush1.msra.mxu0 0.0
    %1018 = vmatprep.subr.mxu0 0.0
    %1019 = vmatpush1.msra.mxu0 0.0
    %1020 = vmatprep.subr.mxu0 0.0
    %1021 = vmatpush1.msra.mxu0 0.0
    %1022 = vmatprep.subr.mxu0 0.0
    %1023 = vmatpush1.msra.mxu0 0.0
    %1024 = vmatprep.subr.mxu0 0.0
    %1025 = vmatpush1.msra.mxu0 0.0
    %1026 = vmatprep.subr.mxu0 0.0
    %1027 = vmatpush1.msra.mxu0 0.0
    %1028 = vmatprep.subr.mxu0 0.0
    %1029 = vmatpush1.msra.mxu0 0.0
    %1030 = vmatprep.subr.mxu0 0.0
    %1031 = vmatpush1.msra.mxu0 0.0
    %1032 = vmatprep.subr.mxu0 0.0
    %1033 = vmatpush1.msra.mxu0 0.0
    %1034 = vmatprep.subr.mxu0 0.0
    %1035 = vmatpush1.msra.mxu0 0.0
    %1036 = vmatprep.subr.mxu0 0.0
    %1037 = vmatpush1.msra.mxu0 0.0
    %1038 = vmatprep.subr.mxu0 0.0
    %1039 = vmatpush1.msra.mxu0 0.0
    %1040 = vmatprep.subr.mxu0 0.0
    %1041 = vmatpush1.msra.mxu0 0.0
    %1042 = vmatprep.subr.mxu0 0.0
    %1043 = vmatpush1.msra.mxu0 0.0
    %1044 = vmatprep.subr.mxu0 0.0
    %1045 = vmatpush1.msra.mxu0 0.0
    %1046 = vmatprep.subr.mxu0 0.0
    %1047 = vmatpush1.msra.mxu0 0.0
    %1048 = vmatprep.mubr.f32.mxu0 0.0
    %1049 = vmatmul.mubr.f32.gmra.mrb[0].mxu0 %v982
    %v1050 = vpop.f32.mrb[0].mxu0
    %v1051 = vadd.f32 0.0, %v1050
    %v1052 = vpop.f32.mrb[0].mxu0
    %1053 = vdwg.mxu0
    %v1054 = vadd.f32 %v267, %v1051
    %v1055 = vxor.u32 %v1054, 2147483648
    %v1056 = vmul.f32 %v1055, 1.442695
    %v1057 = vpow.pop %v1056
    %v1058 = vadd.f32 %v1057, 1.0
    %v1059 = vrcp.pop %v1058
    %v1060 = vmul.f32 1.0, %v1059
    %v1061 = vtanh.pop %v1054
    %v1062 = vmul.f32 %v1060, %v972
    %1064 = vrot.lane.b32.xlu0 %v1061, 64
    %v1065 = vpop.permute.xlu0 %1064
    %v1067 = vmul.f32 %v1060, %v1065
    %1069 = vrot.lane.b32.xlu0 %v1067, 32
    %v1070 = vpop.permute.xlu0 %1069
    %v1072 = vadd.f32 %v1062, %v1070
    %v1073 = vtanh.pop %v1072
    %1075 = vrot.lane.b32.xlu0 %v1073, 64
    %v1076 = vpop.permute.xlu0 %1075
    %v1078 = vmul.f32 %v1060, %v1076
    %1080 = vrot.lane.b32.xlu0 %v1078, 32
    %v1081 = vpop.permute.xlu0 %1080
    %1083 = vst.msk [vmem:[#allocation14] sm:$0xff] %vm276, %v1081
    %1085 = vrot.lane.b32.xlu0 %v1072, 96
    %v1086 = vpop.permute.xlu0 %1085
    %1088 = vst.msk [vmem:[#allocation16] sm:$0xff] %vm276, %v1086
    %v1089 = vld [vmem:[#allocation8] sm:$0xff]
    %v1090 = vld [vmem:[#allocation8 + $0x8] sm:$0xff]
    %v1091 = vld [vmem:[#allocation8 + $0x10] sm:$0xff]
    %v1092 = vld [vmem:[#allocation8 + $0x18] sm:$0xff]
    %v1093 = vld [vmem:[%s8] sm:$0x1]
    %v1095 = vlaneseq
    %v1096 = vshrl.u32 %v1095, 7
    %v1097 = vsub.s32 0, %v1096
    %v1098 = vrot.slane %v1093, %v1097
    %v1100 = vsel %vm276, %v1081, 0
    %1102 = vmatprep.subr.mxu0 0.0
    %1103 = vmatpush1.msra.mxu0 %v1089
    %1104 = vmatprep.subr.mxu0 0.0
    %1105 = vmatpush1.msra.mxu0 %v1090
    %1106 = vmatprep.subr.mxu0 0.0
    %1107 = vmatpush1.msra.mxu0 %v1091
    %1108 = vmatprep.subr.mxu0 0.0
    %1109 = vmatpush1.msra.mxu0 %v1092
    %1110 = vmatprep.subr.mxu0 0.0
    %1111 = vmatpush1.msra.mxu0 0.0
    %1112 = vmatprep.subr.mxu0 0.0
    %1113 = vmatpush1.msra.mxu0 0.0
    %1114 = vmatprep.subr.mxu0 0.0
    %1115 = vmatpush1.msra.mxu0 0.0
    %1116 = vmatprep.subr.mxu0 0.0
    %1117 = vmatpush1.msra.mxu0 0.0
    %1118 = vmatprep.subr.mxu0 0.0
    %1119 = vmatpush1.msra.mxu0 0.0
    %1120 = vmatprep.subr.mxu0 0.0
    %1121 = vmatpush1.msra.mxu0 0.0
    %1122 = vmatprep.subr.mxu0 0.0
    %1123 = vmatpush1.msra.mxu0 0.0
    %1124 = vmatprep.subr.mxu0 0.0
    %1125 = vmatpush1.msra.mxu0 0.0
    %1126 = vmatprep.subr.mxu0 0.0
    %1127 = vmatpush1.msra.mxu0 0.0
    %1128 = vmatprep.subr.mxu0 0.0
    %1129 = vmatpush1.msra.mxu0 0.0
    %1130 = vmatprep.subr.mxu0 0.0
    %1131 = vmatpush1.msra.mxu0 0.0
    %1132 = vmatprep.subr.mxu0 0.0
    %1133 = vmatpush1.msra.mxu0 0.0
    %1134 = vmatprep.subr.mxu0 0.0
    %1135 = vmatpush1.msra.mxu0 0.0
    %1136 = vmatprep.subr.mxu0 0.0
    %1137 = vmatpush1.msra.mxu0 0.0
    %1138 = vmatprep.subr.mxu0 0.0
    %1139 = vmatpush1.msra.mxu0 0.0
    %1140 = vmatprep.subr.mxu0 0.0
    %1141 = vmatpush1.msra.mxu0 0.0
    %1142 = vmatprep.subr.mxu0 0.0
    %1143 = vmatpush1.msra.mxu0 0.0
    %1144 = vmatprep.subr.mxu0 0.0
    %1145 = vmatpush1.msra.mxu0 0.0
    %1146 = vmatprep.subr.mxu0 0.0
    %1147 = vmatpush1.msra.mxu0 0.0
    %1148 = vmatprep.subr.mxu0 0.0
    %1149 = vmatpush1.msra.mxu0 0.0
    %1150 = vmatprep.subr.mxu0 0.0
    %1151 = vmatpush1.msra.mxu0 0.0
    %1152 = vmatprep.subr.mxu0 0.0
    %1153 = vmatpush1.msra.mxu0 0.0
    %1154 = vmatprep.subr.mxu0 0.0
    %1155 = vmatpush1.msra.mxu0 0.0
    %1156 = vmatprep.subr.mxu0 0.0
    %1157 = vmatpush1.msra.mxu0 0.0
    %1158 = vmatprep.subr.mxu0 0.0
    %1159 = vmatpush1.msra.mxu0 0.0
    %1160 = vmatprep.subr.mxu0 0.0
    %1161 = vmatpush1.msra.mxu0 0.0
    %1162 = vmatprep.subr.mxu0 0.0
    %1163 = vmatpush1.msra.mxu0 0.0
    %1164 = vmatprep.subr.mxu0 0.0
    %1165 = vmatpush1.msra.mxu0 0.0
    %1166 = vmatprep.mubr.f32.mxu0 0.0
    %1167 = vmatmul.mubr.f32.gmra.mrb[0].mxu0 %v382
    %v1168 = vpop.f32.mrb[0].mxu0
    %v1169 = vadd.f32 %v1098, %v1168
    %v1170 = vpop.f32.mrb[0].mxu0
    %1171 = vmatprep.mubr.f32.mxu0 0.0
    %1172 = vmatmul.mubr.f32.gmra.mrb[0].mxu0 %v482
    %v1173 = vpop.f32.mrb[0].mxu0
    %v1174 = vadd.f32 %v1098, %v1173
    %v1175 = vpop.f32.mrb[0].mxu0
    %1176 = vmatprep.mubr.f32.mxu0 0.0
    %1177 = vmatmul.mubr.f32.gmra.mrb[0].mxu0 %v582
    %v1178 = vpop.f32.mrb[0].mxu0
    %v1179 = vadd.f32 %v1098, %v1178
    %v1180 = vpop.f32.mrb[0].mxu0
    %1181 = vmatprep.mubr.f32.mxu0 0.0
    %1182 = vmatmul.mubr.f32.gmra.mrb[0].mxu0 %v682
    %v1183 = vpop.f32.mrb[0].mxu0
    %v1184 = vadd.f32 %v1098, %v1183
    %v1185 = vpop.f32.mrb[0].mxu0
    %1186 = vmatprep.mubr.f32.mxu0 0.0
    %1187 = vmatmul.mubr.f32.gmra.mrb[0].mxu0 %v782
    %v1188 = vpop.f32.mrb[0].mxu0
    %v1189 = vadd.f32 %v1098, %v1188
    %v1190 = vpop.f32.mrb[0].mxu0
    %1191 = vmatprep.mubr.f32.mxu0 0.0
    %1192 = vmatmul.mubr.f32.gmra.mrb[0].mxu0 %v882
    %v1193 = vpop.f32.mrb[0].mxu0
    %v1194 = vadd.f32 %v1098, %v1193
    %v1195 = vpop.f32.mrb[0].mxu0
    %1196 = vmatprep.mubr.f32.mxu0 0.0
    %1197 = vmatmul.mubr.f32.gmra.mrb[0].mxu0 %v982
    %v1198 = vpop.f32.mrb[0].mxu0
    %v1199 = vadd.f32 %v1098, %v1198
    %v1200 = vpop.f32.mrb[0].mxu0
    %1201 = vmatprep.mubr.f32.mxu0 0.0
    %1202 = vmatmul.mubr.f32.gmra.mrb[0].mxu0 %v1100
    %v1203 = vpop.f32.mrb[0].mxu0
    %v1204 = vadd.f32 %v1098, %v1203
    %v1205 = vpop.f32.mrb[0].mxu0
    %1206 = vdwg.mxu0
    %v1207 = vld [vmem:[#allocation10] sm:$0xff]
    %v1208 = vld [vmem:[#allocation10 + $0x8] sm:$0xff]
    %v1209 = vld [vmem:[#allocation10 + $0x10] sm:$0xff]
    %v1210 = vld [vmem:[#allocation10 + $0x18] sm:$0xff]
    %s1211 = scalar_lea.vmem %s1, 8
    %v1212 = vld [vmem:[%s1211] sm:$0xff]
    %s1213 = scalar_lea.vmem [#allocation2], 8
    %v1214 = vld [vmem:[%s1213] sm:$0xff]
    %v1216 = vsel %vm276, %v1212, 0
    %1218 = vmatprep.subr.mxu0 0.0
    %1219 = vmatpush1.msra.mxu0 %v1207
    %1220 = vmatprep.subr.mxu0 0.0
    %1221 = vmatpush1.msra.mxu0 %v1208
    %1222 = vmatprep.subr.mxu0 0.0
    %1223 = vmatpush1.msra.mxu0 %v1209
    %1224 = vmatprep.subr.mxu0 0.0
    %1225 = vmatpush1.msra.mxu0 %v1210
    %1226 = vmatprep.subr.mxu0 0.0
    %1227 = vmatpush1.msra.mxu0 0.0
    %1228 = vmatprep.subr.mxu0 0.0
    %1229 = vmatpush1.msra.mxu0 0.0
    %1230 = vmatprep.subr.mxu0 0.0
    %1231 = vmatpush1.msra.mxu0 0.0
    %1232 = vmatprep.subr.mxu0 0.0
    %1233 = vmatpush1.msra.mxu0 0.0
    %1234 = vmatprep.subr.mxu0 0.0
    %1235 = vmatpush1.msra.mxu0 0.0
    %1236 = vmatprep.subr.mxu0 0.0
    %1237 = vmatpush1.msra.mxu0 0.0
    %1238 = vmatprep.subr.mxu0 0.0
    %1239 = vmatpush1.msra.mxu0 0.0
    %1240 = vmatprep.subr.mxu0 0.0
    %1241 = vmatpush1.msra.mxu0 0.0
    %1242 = vmatprep.subr.mxu0 0.0
    %1243 = vmatpush1.msra.mxu0 0.0
    %1244 = vmatprep.subr.mxu0 0.0
    %1245 = vmatpush1.msra.mxu0 0.0
    %1246 = vmatprep.subr.mxu0 0.0
    %1247 = vmatpush1.msra.mxu0 0.0
    %1248 = vmatprep.subr.mxu0 0.0
    %1249 = vmatpush1.msra.mxu0 0.0
    %1250 = vmatprep.subr.mxu0 0.0
    %1251 = vmatpush1.msra.mxu0 0.0
    %1252 = vmatprep.subr.mxu0 0.0
    %1253 = vmatpush1.msra.mxu0 0.0
    %1254 = vmatprep.subr.mxu0 0.0
    %1255 = vmatpush1.msra.mxu0 0.0
    %1256 = vmatprep.subr.mxu0 0.0
    %1257 = vmatpush1.msra.mxu0 0.0
    %1258 = vmatprep.subr.mxu0 0.0
    %1259 = vmatpush1.msra.mxu0 0.0
    %1260 = vmatprep.subr.mxu0 0.0
    %1261 = vmatpush1.msra.mxu0 0.0
    %1262 = vmatprep.subr.mxu0 0.0
    %1263 = vmatpush1.msra.mxu0 0.0
    %1264 = vmatprep.subr.mxu0 0.0
    %1265 = vmatpush1.msra.mxu0 0.0
    %1266 = vmatprep.subr.mxu0 0.0
    %1267 = vmatpush1.msra.mxu0 0.0
    %1268 = vmatprep.subr.mxu0 0.0
    %1269 = vmatpush1.msra.mxu0 0.0
    %1270 = vmatprep.subr.mxu0 0.0
    %1271 = vmatpush1.msra.mxu0 0.0
    %1272 = vmatprep.subr.mxu0 0.0
    %1273 = vmatpush1.msra.mxu0 0.0
    %1274 = vmatprep.subr.mxu0 0.0
    %1275 = vmatpush1.msra.mxu0 0.0
    %1276 = vmatprep.subr.mxu0 0.0
    %1277 = vmatpush1.msra.mxu0 0.0
    %1278 = vmatprep.subr.mxu0 0.0
    %1279 = vmatpush1.msra.mxu0 0.0
    %1280 = vmatprep.subr.mxu0 0.0
    %1281 = vmatpush1.msra.mxu0 0.0
    %1282 = vmatprep.mubr.f32.mxu0 0.0
    %1283 = vmatmul.mubr.f32.gmra.mrb[0].mxu0 %v1216
    %v1284 = vpop.f32.mrb[0].mxu0
    %v1285 = vadd.f32 0.0, %v1284
    %v1286 = vpop.f32.mrb[0].mxu0
    %1287 = vdwg.mxu0
    %v1288 = vadd.f32 %v1169, %v1285
    %v1289 = vxor.u32 %v1288, 2147483648
    %v1290 = vmul.f32 %v1289, 1.442695
    %v1291 = vpow.pop %v1290
    %v1292 = vadd.f32 %v1291, 1.0
    %v1293 = vrcp.pop %v1292
    %v1294 = vmul.f32 1.0, %v1293
    %v1295 = vtanh.pop %v1288
    %1297 = vrot.lane.b32.xlu0 %v1214, 32
    %v1298 = vpop.permute.xlu0 %1297
    %v1300 = vmul.f32 %v1294, %v1298
    %1302 = vrot.lane.b32.xlu0 %v1295, 64
    %v1303 = vpop.permute.xlu0 %1302
    %v1305 = vmul.f32 %v1294, %v1303
    %1307 = vrot.lane.b32.xlu0 %v1305, 32
    %v1308 = vpop.permute.xlu0 %1307
    %v1310 = vadd.f32 %v1300, %v1308
    %v1311 = vtanh.pop %v1310
    %1313 = vrot.lane.b32.xlu0 %v1311, 64
    %v1314 = vpop.permute.xlu0 %1313
    %v1316 = vmul.f32 %v1294, %v1314
    %1318 = vrot.lane.b32.xlu0 %v1316, 32
    %v1319 = vpop.permute.xlu0 %1318
    %v1320 = vsel %vm276, %v1319, 0
    %1322 = vmatprep.subr.mxu0 0.0
    %1323 = vmatpush1.msra.mxu0 %v1207
    %1324 = vmatprep.subr.mxu0 0.0
    %1325 = vmatpush1.msra.mxu0 %v1208
    %1326 = vmatprep.subr.mxu0 0.0
    %1327 = vmatpush1.msra.mxu0 %v1209
    %1328 = vmatprep.subr.mxu0 0.0
    %1329 = vmatpush1.msra.mxu0 %v1210
    %1330 = vmatprep.subr.mxu0 0.0
    %1331 = vmatpush1.msra.mxu0 0.0
    %1332 = vmatprep.subr.mxu0 0.0
    %1333 = vmatpush1.msra.mxu0 0.0
    %1334 = vmatprep.subr.mxu0 0.0
    %1335 = vmatpush1.msra.mxu0 0.0
    %1336 = vmatprep.subr.mxu0 0.0
    %1337 = vmatpush1.msra.mxu0 0.0
    %1338 = vmatprep.subr.mxu0 0.0
    %1339 = vmatpush1.msra.mxu0 0.0
    %1340 = vmatprep.subr.mxu0 0.0
    %1341 = vmatpush1.msra.mxu0 0.0
    %1342 = vmatprep.subr.mxu0 0.0
    %1343 = vmatpush1.msra.mxu0 0.0
    %1344 = vmatprep.subr.mxu0 0.0
    %1345 = vmatpush1.msra.mxu0 0.0
    %1346 = vmatprep.subr.mxu0 0.0
    %1347 = vmatpush1.msra.mxu0 0.0
    %1348 = vmatprep.subr.mxu0 0.0
    %1349 = vmatpush1.msra.mxu0 0.0
    %1350 = vmatprep.subr.mxu0 0.0
    %1351 = vmatpush1.msra.mxu0 0.0
    %1352 = vmatprep.subr.mxu0 0.0
    %1353 = vmatpush1.msra.mxu0 0.0
    %1354 = vmatprep.subr.mxu0 0.0
    %1355 = vmatpush1.msra.mxu0 0.0
    %1356 = vmatprep.subr.mxu0 0.0
    %1357 = vmatpush1.msra.mxu0 0.0
    %1358 = vmatprep.subr.mxu0 0.0
    %1359 = vmatpush1.msra.mxu0 0.0
    %1360 = vmatprep.subr.mxu0 0.0
    %1361 = vmatpush1.msra.mxu0 0.0
    %1362 = vmatprep.subr.mxu0 0.0
    %1363 = vmatpush1.msra.mxu0 0.0
    %1364 = vmatprep.subr.mxu0 0.0
    %1365 = vmatpush1.msra.mxu0 0.0
    %1366 = vmatprep.subr.mxu0 0.0
    %1367 = vmatpush1.msra.mxu0 0.0
    %1368 = vmatprep.subr.mxu0 0.0
    %1369 = vmatpush1.msra.mxu0 0.0
    %1370 = vmatprep.subr.mxu0 0.0
    %1371 = vmatpush1.msra.mxu0 0.0
    %1372 = vmatprep.subr.mxu0 0.0
    %1373 = vmatpush1.msra.mxu0 0.0
    %1374 = vmatprep.subr.mxu0 0.0
    %1375 = vmatpush1.msra.mxu0 0.0
    %1376 = vmatprep.subr.mxu0 0.0
    %1377 = vmatpush1.msra.mxu0 0.0
    %1378 = vmatprep.subr.mxu0 0.0
    %1379 = vmatpush1.msra.mxu0 0.0
    %1380 = vmatprep.subr.mxu0 0.0
    %1381 = vmatpush1.msra.mxu0 0.0
    %1382 = vmatprep.subr.mxu0 0.0
    %1383 = vmatpush1.msra.mxu0 0.0
    %1384 = vmatprep.subr.mxu0 0.0
    %1385 = vmatpush1.msra.mxu0 0.0
    %1386 = vmatprep.mubr.f32.mxu0 0.0
    %1387 = vmatmul.mubr.f32.gmra.mrb[0].mxu0 %v1320
    %v1388 = vpop.f32.mrb[0].mxu0
    %v1389 = vadd.f32 0.0, %v1388
    %v1390 = vpop.f32.mrb[0].mxu0
    %1391 = vdwg.mxu0
    %v1392 = vadd.f32 %v1174, %v1389
    %v1393 = vxor.u32 %v1392, 2147483648
    %v1394 = vmul.f32 %v1393, 1.442695
    %v1395 = vpow.pop %v1394
    %v1396 = vadd.f32 %v1395, 1.0
    %v1397 = vrcp.pop %v1396
    %v1398 = vmul.f32 1.0, %v1397
    %v1399 = vtanh.pop %v1392
    %v1400 = vmul.f32 %v1398, %v1310
    %1402 = vrot.lane.b32.xlu0 %v1399, 64
    %v1403 = vpop.permute.xlu0 %1402
    %v1405 = vmul.f32 %v1398, %v1403
    %1407 = vrot.lane.b32.xlu0 %v1405, 32
    %v1408 = vpop.permute.xlu0 %1407
    %v1410 = vadd.f32 %v1400, %v1408
    %v1411 = vtanh.pop %v1410
    %1413 = vrot.lane.b32.xlu0 %v1411, 64
    %v1414 = vpop.permute.xlu0 %1413
    %v1416 = vmul.f32 %v1398, %v1414
    %1418 = vrot.lane.b32.xlu0 %v1416, 32
    %v1419 = vpop.permute.xlu0 %1418
    %v1420 = vsel %vm276, %v1419, 0
    %1422 = vmatprep.subr.mxu0 0.0
    %1423 = vmatpush1.msra.mxu0 %v1207
    %1424 = vmatprep.subr.mxu0 0.0
    %1425 = vmatpush1.msra.mxu0 %v1208
    %1426 = vmatprep.subr.mxu0 0.0
    %1427 = vmatpush1.msra.mxu0 %v1209
    %1428 = vmatprep.subr.mxu0 0.0
    %1429 = vmatpush1.msra.mxu0 %v1210
    %1430 = vmatprep.subr.mxu0 0.0
    %1431 = vmatpush1.msra.mxu0 0.0
    %1432 = vmatprep.subr.mxu0 0.0
    %1433 = vmatpush1.msra.mxu0 0.0
    %1434 = vmatprep.subr.mxu0 0.0
    %1435 = vmatpush1.msra.mxu0 0.0
    %1436 = vmatprep.subr.mxu0 0.0
    %1437 = vmatpush1.msra.mxu0 0.0
    %1438 = vmatprep.subr.mxu0 0.0
    %1439 = vmatpush1.msra.mxu0 0.0
    %1440 = vmatprep.subr.mxu0 0.0
    %1441 = vmatpush1.msra.mxu0 0.0
    %1442 = vmatprep.subr.mxu0 0.0
    %1443 = vmatpush1.msra.mxu0 0.0
    %1444 = vmatprep.subr.mxu0 0.0
    %1445 = vmatpush1.msra.mxu0 0.0
    %1446 = vmatprep.subr.mxu0 0.0
    %1447 = vmatpush1.msra.mxu0 0.0
    %1448 = vmatprep.subr.mxu0 0.0
    %1449 = vmatpush1.msra.mxu0 0.0
    %1450 = vmatprep.subr.mxu0 0.0
    %1451 = vmatpush1.msra.mxu0 0.0
    %1452 = vmatprep.subr.mxu0 0.0
    %1453 = vmatpush1.msra.mxu0 0.0
    %1454 = vmatprep.subr.mxu0 0.0
    %1455 = vmatpush1.msra.mxu0 0.0
    %1456 = vmatprep.subr.mxu0 0.0
    %1457 = vmatpush1.msra.mxu0 0.0
    %1458 = vmatprep.subr.mxu0 0.0
    %1459 = vmatpush1.msra.mxu0 0.0
    %1460 = vmatprep.subr.mxu0 0.0
    %1461 = vmatpush1.msra.mxu0 0.0
    %1462 = vmatprep.subr.mxu0 0.0
    %1463 = vmatpush1.msra.mxu0 0.0
    %1464 = vmatprep.subr.mxu0 0.0
    %1465 = vmatpush1.msra.mxu0 0.0
    %1466 = vmatprep.subr.mxu0 0.0
    %1467 = vmatpush1.msra.mxu0 0.0
    %1468 = vmatprep.subr.mxu0 0.0
    %1469 = vmatpush1.msra.mxu0 0.0
    %1470 = vmatprep.subr.mxu0 0.0
    %1471 = vmatpush1.msra.mxu0 0.0
    %1472 = vmatprep.subr.mxu0 0.0
    %1473 = vmatpush1.msra.mxu0 0.0
    %1474 = vmatprep.subr.mxu0 0.0
    %1475 = vmatpush1.msra.mxu0 0.0
    %1476 = vmatprep.subr.mxu0 0.0
    %1477 = vmatpush1.msra.mxu0 0.0
    %1478 = vmatprep.subr.mxu0 0.0
    %1479 = vmatpush1.msra.mxu0 0.0
    %1480 = vmatprep.subr.mxu0 0.0
    %1481 = vmatpush1.msra.mxu0 0.0
    %1482 = vmatprep.subr.mxu0 0.0
    %1483 = vmatpush1.msra.mxu0 0.0
    %1484 = vmatprep.subr.mxu0 0.0
    %1485 = vmatpush1.msra.mxu0 0.0
    %1486 = vmatprep.mubr.f32.mxu0 0.0
    %1487 = vmatmul.mubr.f32.gmra.mrb[0].mxu0 %v1420
    %v1488 = vpop.f32.mrb[0].mxu0
    %v1489 = vadd.f32 0.0, %v1488
    %v1490 = vpop.f32.mrb[0].mxu0
    %1491 = vdwg.mxu0
    %v1492 = vadd.f32 %v1179, %v1489
    %v1493 = vxor.u32 %v1492, 2147483648
    %v1494 = vmul.f32 %v1493, 1.442695
    %v1495 = vpow.pop %v1494
    %v1496 = vadd.f32 %v1495, 1.0
    %v1497 = vrcp.pop %v1496
    %v1498 = vmul.f32 1.0, %v1497
    %v1499 = vtanh.pop %v1492
    %v1500 = vmul.f32 %v1498, %v1410
    %1502 = vrot.lane.b32.xlu0 %v1499, 64
    %v1503 = vpop.permute.xlu0 %1502
    %v1505 = vmul.f32 %v1498, %v1503
    %1507 = vrot.lane.b32.xlu0 %v1505, 32
    %v1508 = vpop.permute.xlu0 %1507
    %v1510 = vadd.f32 %v1500, %v1508
    %v1511 = vtanh.pop %v1510
    %1513 = vrot.lane.b32.xlu0 %v1511, 64
    %v1514 = vpop.permute.xlu0 %1513
    %v1516 = vmul.f32 %v1498, %v1514
    %1518 = vrot.lane.b32.xlu0 %v1516, 32
    %v1519 = vpop.permute.xlu0 %1518
    %v1520 = vsel %vm276, %v1519, 0
    %1522 = vmatprep.subr.mxu0 0.0
    %1523 = vmatpush1.msra.mxu0 %v1207
    %1524 = vmatprep.subr.mxu0 0.0
    %1525 = vmatpush1.msra.mxu0 %v1208
    %1526 = vmatprep.subr.mxu0 0.0
    %1527 = vmatpush1.msra.mxu0 %v1209
    %1528 = vmatprep.subr.mxu0 0.0
    %1529 = vmatpush1.msra.mxu0 %v1210
    %1530 = vmatprep.subr.mxu0 0.0
    %1531 = vmatpush1.msra.mxu0 0.0
    %1532 = vmatprep.subr.mxu0 0.0
    %1533 = vmatpush1.msra.mxu0 0.0
    %1534 = vmatprep.subr.mxu0 0.0
    %1535 = vmatpush1.msra.mxu0 0.0
    %1536 = vmatprep.subr.mxu0 0.0
    %1537 = vmatpush1.msra.mxu0 0.0
    %1538 = vmatprep.subr.mxu0 0.0
    %1539 = vmatpush1.msra.mxu0 0.0
    %1540 = vmatprep.subr.mxu0 0.0
    %1541 = vmatpush1.msra.mxu0 0.0
    %1542 = vmatprep.subr.mxu0 0.0
    %1543 = vmatpush1.msra.mxu0 0.0
    %1544 = vmatprep.subr.mxu0 0.0
    %1545 = vmatpush1.msra.mxu0 0.0
    %1546 = vmatprep.subr.mxu0 0.0
    %1547 = vmatpush1.msra.mxu0 0.0
    %1548 = vmatprep.subr.mxu0 0.0
    %1549 = vmatpush1.msra.mxu0 0.0
    %1550 = vmatprep.subr.mxu0 0.0
    %1551 = vmatpush1.msra.mxu0 0.0
    %1552 = vmatprep.subr.mxu0 0.0
    %1553 = vmatpush1.msra.mxu0 0.0
    %1554 = vmatprep.subr.mxu0 0.0
    %1555 = vmatpush1.msra.mxu0 0.0
    %1556 = vmatprep.subr.mxu0 0.0
    %1557 = vmatpush1.msra.mxu0 0.0
    %1558 = vmatprep.subr.mxu0 0.0
    %1559 = vmatpush1.msra.mxu0 0.0
    %1560 = vmatprep.subr.mxu0 0.0
    %1561 = vmatpush1.msra.mxu0 0.0
    %1562 = vmatprep.subr.mxu0 0.0
    %1563 = vmatpush1.msra.mxu0 0.0
    %1564 = vmatprep.subr.mxu0 0.0
    %1565 = vmatpush1.msra.mxu0 0.0
    %1566 = vmatprep.subr.mxu0 0.0
    %1567 = vmatpush1.msra.mxu0 0.0
    %1568 = vmatprep.subr.mxu0 0.0
    %1569 = vmatpush1.msra.mxu0 0.0
    %1570 = vmatprep.subr.mxu0 0.0
    %1571 = vmatpush1.msra.mxu0 0.0
    %1572 = vmatprep.subr.mxu0 0.0
    %1573 = vmatpush1.msra.mxu0 0.0
    %1574 = vmatprep.subr.mxu0 0.0
    %1575 = vmatpush1.msra.mxu0 0.0
    %1576 = vmatprep.subr.mxu0 0.0
    %1577 = vmatpush1.msra.mxu0 0.0
    %1578 = vmatprep.subr.mxu0 0.0
    %1579 = vmatpush1.msra.mxu0 0.0
    %1580 = vmatprep.subr.mxu0 0.0
    %1581 = vmatpush1.msra.mxu0 0.0
    %1582 = vmatprep.subr.mxu0 0.0
    %1583 = vmatpush1.msra.mxu0 0.0
    %1584 = vmatprep.subr.mxu0 0.0
    %1585 = vmatpush1.msra.mxu0 0.0
    %1586 = vmatprep.mubr.f32.mxu0 0.0
    %1587 = vmatmul.mubr.f32.gmra.mrb[0].mxu0 %v1520
    %v1588 = vpop.f32.mrb[0].mxu0
    %v1589 = vadd.f32 0.0, %v1588
    %v1590 = vpop.f32.mrb[0].mxu0
    %1591 = vdwg.mxu0
    %v1592 = vadd.f32 %v1184, %v1589
    %v1593 = vxor.u32 %v1592, 2147483648
    %v1594 = vmul.f32 %v1593, 1.442695
    %v1595 = vpow.pop %v1594
    %v1596 = vadd.f32 %v1595, 1.0
    %v1597 = vrcp.pop %v1596
    %v1598 = vmul.f32 1.0, %v1597
    %v1599 = vtanh.pop %v1592
    %v1600 = vmul.f32 %v1598, %v1510
    %1602 = vrot.lane.b32.xlu0 %v1599, 64
    %v1603 = vpop.permute.xlu0 %1602
    %v1605 = vmul.f32 %v1598, %v1603
    %1607 = vrot.lane.b32.xlu0 %v1605, 32
    %v1608 = vpop.permute.xlu0 %1607
    %v1610 = vadd.f32 %v1600, %v1608
    %v1611 = vtanh.pop %v1610
    %1613 = vrot.lane.b32.xlu0 %v1611, 64
    %v1614 = vpop.permute.xlu0 %1613
    %v1616 = vmul.f32 %v1598, %v1614
    %1618 = vrot.lane.b32.xlu0 %v1616, 32
    %v1619 = vpop.permute.xlu0 %1618
    %v1620 = vsel %vm276, %v1619, 0
    %1622 = vmatprep.subr.mxu0 0.0
    %1623 = vmatpush1.msra.mxu0 %v1207
    %1624 = vmatprep.subr.mxu0 0.0
    %1625 = vmatpush1.msra.mxu0 %v1208
    %1626 = vmatprep.subr.mxu0 0.0
    %1627 = vmatpush1.msra.mxu0 %v1209
    %1628 = vmatprep.subr.mxu0 0.0
    %1629 = vmatpush1.msra.mxu0 %v1210
    %1630 = vmatprep.subr.mxu0 0.0
    %1631 = vmatpush1.msra.mxu0 0.0
    %1632 = vmatprep.subr.mxu0 0.0
    %1633 = vmatpush1.msra.mxu0 0.0
    %1634 = vmatprep.subr.mxu0 0.0
    %1635 = vmatpush1.msra.mxu0 0.0
    %1636 = vmatprep.subr.mxu0 0.0
    %1637 = vmatpush1.msra.mxu0 0.0
    %1638 = vmatprep.subr.mxu0 0.0
    %1639 = vmatpush1.msra.mxu0 0.0
    %1640 = vmatprep.subr.mxu0 0.0
    %1641 = vmatpush1.msra.mxu0 0.0
    %1642 = vmatprep.subr.mxu0 0.0
    %1643 = vmatpush1.msra.mxu0 0.0
    %1644 = vmatprep.subr.mxu0 0.0
    %1645 = vmatpush1.msra.mxu0 0.0
    %1646 = vmatprep.subr.mxu0 0.0
    %1647 = vmatpush1.msra.mxu0 0.0
    %1648 = vmatprep.subr.mxu0 0.0
    %1649 = vmatpush1.msra.mxu0 0.0
    %1650 = vmatprep.subr.mxu0 0.0
    %1651 = vmatpush1.msra.mxu0 0.0
    %1652 = vmatprep.subr.mxu0 0.0
    %1653 = vmatpush1.msra.mxu0 0.0
    %1654 = vmatprep.subr.mxu0 0.0
    %1655 = vmatpush1.msra.mxu0 0.0
    %1656 = vmatprep.subr.mxu0 0.0
    %1657 = vmatpush1.msra.mxu0 0.0
    %1658 = vmatprep.subr.mxu0 0.0
    %1659 = vmatpush1.msra.mxu0 0.0
    %1660 = vmatprep.subr.mxu0 0.0
    %1661 = vmatpush1.msra.mxu0 0.0
    %1662 = vmatprep.subr.mxu0 0.0
    %1663 = vmatpush1.msra.mxu0 0.0
    %1664 = vmatprep.subr.mxu0 0.0
    %1665 = vmatpush1.msra.mxu0 0.0
    %1666 = vmatprep.subr.mxu0 0.0
    %1667 = vmatpush1.msra.mxu0 0.0
    %1668 = vmatprep.subr.mxu0 0.0
    %1669 = vmatpush1.msra.mxu0 0.0
    %1670 = vmatprep.subr.mxu0 0.0
    %1671 = vmatpush1.msra.mxu0 0.0
    %1672 = vmatprep.subr.mxu0 0.0
    %1673 = vmatpush1.msra.mxu0 0.0
    %1674 = vmatprep.subr.mxu0 0.0
    %1675 = vmatpush1.msra.mxu0 0.0
    %1676 = vmatprep.subr.mxu0 0.0
    %1677 = vmatpush1.msra.mxu0 0.0
    %1678 = vmatprep.subr.mxu0 0.0
    %1679 = vmatpush1.msra.mxu0 0.0
    %1680 = vmatprep.subr.mxu0 0.0
    %1681 = vmatpush1.msra.mxu0 0.0
    %1682 = vmatprep.subr.mxu0 0.0
    %1683 = vmatpush1.msra.mxu0 0.0
    %1684 = vmatprep.subr.mxu0 0.0
    %1685 = vmatpush1.msra.mxu0 0.0
    %1686 = vmatprep.mubr.f32.mxu0 0.0
    %1687 = vmatmul.mubr.f32.gmra.mrb[0].mxu0 %v1620
    %v1688 = vpop.f32.mrb[0].mxu0
    %v1689 = vadd.f32 0.0, %v1688
    %v1690 = vpop.f32.mrb[0].mxu0
    %1691 = vdwg.mxu0
    %v1692 = vadd.f32 %v1189, %v1689
    %v1693 = vxor.u32 %v1692, 2147483648
    %v1694 = vmul.f32 %v1693, 1.442695
    %v1695 = vpow.pop %v1694
    %v1696 = vadd.f32 %v1695, 1.0
    %v1697 = vrcp.pop %v1696
    %v1698 = vmul.f32 1.0, %v1697
    %v1699 = vtanh.pop %v1692
    %v1700 = vmul.f32 %v1698, %v1610
    %1702 = vrot.lane.b32.xlu0 %v1699, 64
    %v1703 = vpop.permute.xlu0 %1702
    %v1705 = vmul.f32 %v1698, %v1703
    %1707 = vrot.lane.b32.xlu0 %v1705, 32
    %v1708 = vpop.permute.xlu0 %1707
    %v1710 = vadd.f32 %v1700, %v1708
    %v1711 = vtanh.pop %v1710
    %1713 = vrot.lane.b32.xlu0 %v1711, 64
    %v1714 = vpop.permute.xlu0 %1713
    %v1716 = vmul.f32 %v1698, %v1714
    %1718 = vrot.lane.b32.xlu0 %v1716, 32
    %v1719 = vpop.permute.xlu0 %1718
    %v1720 = vsel %vm276, %v1719, 0
    %1722 = vmatprep.subr.mxu0 0.0
    %1723 = vmatpush1.msra.mxu0 %v1207
    %1724 = vmatprep.subr.mxu0 0.0
    %1725 = vmatpush1.msra.mxu0 %v1208
    %1726 = vmatprep.subr.mxu0 0.0
    %1727 = vmatpush1.msra.mxu0 %v1209
    %1728 = vmatprep.subr.mxu0 0.0
    %1729 = vmatpush1.msra.mxu0 %v1210
    %1730 = vmatprep.subr.mxu0 0.0
    %1731 = vmatpush1.msra.mxu0 0.0
    %1732 = vmatprep.subr.mxu0 0.0
    %1733 = vmatpush1.msra.mxu0 0.0
    %1734 = vmatprep.subr.mxu0 0.0
    %1735 = vmatpush1.msra.mxu0 0.0
    %1736 = vmatprep.subr.mxu0 0.0
    %1737 = vmatpush1.msra.mxu0 0.0
    %1738 = vmatprep.subr.mxu0 0.0
    %1739 = vmatpush1.msra.mxu0 0.0
    %1740 = vmatprep.subr.mxu0 0.0
    %1741 = vmatpush1.msra.mxu0 0.0
    %1742 = vmatprep.subr.mxu0 0.0
    %1743 = vmatpush1.msra.mxu0 0.0
    %1744 = vmatprep.subr.mxu0 0.0
    %1745 = vmatpush1.msra.mxu0 0.0
    %1746 = vmatprep.subr.mxu0 0.0
    %1747 = vmatpush1.msra.mxu0 0.0
    %1748 = vmatprep.subr.mxu0 0.0
    %1749 = vmatpush1.msra.mxu0 0.0
    %1750 = vmatprep.subr.mxu0 0.0
    %1751 = vmatpush1.msra.mxu0 0.0
    %1752 = vmatprep.subr.mxu0 0.0
    %1753 = vmatpush1.msra.mxu0 0.0
    %1754 = vmatprep.subr.mxu0 0.0
    %1755 = vmatpush1.msra.mxu0 0.0
    %1756 = vmatprep.subr.mxu0 0.0
    %1757 = vmatpush1.msra.mxu0 0.0
    %1758 = vmatprep.subr.mxu0 0.0
    %1759 = vmatpush1.msra.mxu0 0.0
    %1760 = vmatprep.subr.mxu0 0.0
    %1761 = vmatpush1.msra.mxu0 0.0
    %1762 = vmatprep.subr.mxu0 0.0
    %1763 = vmatpush1.msra.mxu0 0.0
    %1764 = vmatprep.subr.mxu0 0.0
    %1765 = vmatpush1.msra.mxu0 0.0
    %1766 = vmatprep.subr.mxu0 0.0
    %1767 = vmatpush1.msra.mxu0 0.0
    %1768 = vmatprep.subr.mxu0 0.0
    %1769 = vmatpush1.msra.mxu0 0.0
    %1770 = vmatprep.subr.mxu0 0.0
    %1771 = vmatpush1.msra.mxu0 0.0
    %1772 = vmatprep.subr.mxu0 0.0
    %1773 = vmatpush1.msra.mxu0 0.0
    %1774 = vmatprep.subr.mxu0 0.0
    %1775 = vmatpush1.msra.mxu0 0.0
    %1776 = vmatprep.subr.mxu0 0.0
    %1777 = vmatpush1.msra.mxu0 0.0
    %1778 = vmatprep.subr.mxu0 0.0
    %1779 = vmatpush1.msra.mxu0 0.0
    %1780 = vmatprep.subr.mxu0 0.0
    %1781 = vmatpush1.msra.mxu0 0.0
    %1782 = vmatprep.subr.mxu0 0.0
    %1783 = vmatpush1.msra.mxu0 0.0
    %1784 = vmatprep.subr.mxu0 0.0
    %1785 = vmatpush1.msra.mxu0 0.0
    %1786 = vmatprep.mubr.f32.mxu0 0.0
    %1787 = vmatmul.mubr.f32.gmra.mrb[0].mxu0 %v1720
    %v1788 = vpop.f32.mrb[0].mxu0
    %v1789 = vadd.f32 0.0, %v1788
    %v1790 = vpop.f32.mrb[0].mxu0
    %1791 = vdwg.mxu0
    %v1792 = vadd.f32 %v1194, %v1789
    %v1793 = vxor.u32 %v1792, 2147483648
    %v1794 = vmul.f32 %v1793, 1.442695
    %v1795 = vpow.pop %v1794
    %v1796 = vadd.f32 %v1795, 1.0
    %v1797 = vrcp.pop %v1796
    %v1798 = vmul.f32 1.0, %v1797
    %v1799 = vtanh.pop %v1792
    %v1800 = vmul.f32 %v1798, %v1710
    %1802 = vrot.lane.b32.xlu0 %v1799, 64
    %v1803 = vpop.permute.xlu0 %1802
    %v1805 = vmul.f32 %v1798, %v1803
    %1807 = vrot.lane.b32.xlu0 %v1805, 32
    %v1808 = vpop.permute.xlu0 %1807
    %v1810 = vadd.f32 %v1800, %v1808
    %v1811 = vtanh.pop %v1810
    %1813 = vrot.lane.b32.xlu0 %v1811, 64
    %v1814 = vpop.permute.xlu0 %1813
    %v1816 = vmul.f32 %v1798, %v1814
    %1818 = vrot.lane.b32.xlu0 %v1816, 32
    %v1819 = vpop.permute.xlu0 %1818
    %v1820 = vsel %vm276, %v1819, 0
    %1822 = vmatprep.subr.mxu0 0.0
    %1823 = vmatpush1.msra.mxu0 %v1207
    %1824 = vmatprep.subr.mxu0 0.0
    %1825 = vmatpush1.msra.mxu0 %v1208
    %1826 = vmatprep.subr.mxu0 0.0
    %1827 = vmatpush1.msra.mxu0 %v1209
    %1828 = vmatprep.subr.mxu0 0.0
    %1829 = vmatpush1.msra.mxu0 %v1210
    %1830 = vmatprep.subr.mxu0 0.0
    %1831 = vmatpush1.msra.mxu0 0.0
    %1832 = vmatprep.subr.mxu0 0.0
    %1833 = vmatpush1.msra.mxu0 0.0
    %1834 = vmatprep.subr.mxu0 0.0
    %1835 = vmatpush1.msra.mxu0 0.0
    %1836 = vmatprep.subr.mxu0 0.0
    %1837 = vmatpush1.msra.mxu0 0.0
    %1838 = vmatprep.subr.mxu0 0.0
    %1839 = vmatpush1.msra.mxu0 0.0
    %1840 = vmatprep.subr.mxu0 0.0
    %1841 = vmatpush1.msra.mxu0 0.0
    %1842 = vmatprep.subr.mxu0 0.0
    %1843 = vmatpush1.msra.mxu0 0.0
    %1844 = vmatprep.subr.mxu0 0.0
    %1845 = vmatpush1.msra.mxu0 0.0
    %1846 = vmatprep.subr.mxu0 0.0
    %1847 = vmatpush1.msra.mxu0 0.0
    %1848 = vmatprep.subr.mxu0 0.0
    %1849 = vmatpush1.msra.mxu0 0.0
    %1850 = vmatprep.subr.mxu0 0.0
    %1851 = vmatpush1.msra.mxu0 0.0
    %1852 = vmatprep.subr.mxu0 0.0
    %1853 = vmatpush1.msra.mxu0 0.0
    %1854 = vmatprep.subr.mxu0 0.0
    %1855 = vmatpush1.msra.mxu0 0.0
    %1856 = vmatprep.subr.mxu0 0.0
    %1857 = vmatpush1.msra.mxu0 0.0
    %1858 = vmatprep.subr.mxu0 0.0
    %1859 = vmatpush1.msra.mxu0 0.0
    %1860 = vmatprep.subr.mxu0 0.0
    %1861 = vmatpush1.msra.mxu0 0.0
    %1862 = vmatprep.subr.mxu0 0.0
    %1863 = vmatpush1.msra.mxu0 0.0
    %1864 = vmatprep.subr.mxu0 0.0
    %1865 = vmatpush1.msra.mxu0 0.0
    %1866 = vmatprep.subr.mxu0 0.0
    %1867 = vmatpush1.msra.mxu0 0.0
    %1868 = vmatprep.subr.mxu0 0.0
    %1869 = vmatpush1.msra.mxu0 0.0
    %1870 = vmatprep.subr.mxu0 0.0
    %1871 = vmatpush1.msra.mxu0 0.0
    %1872 = vmatprep.subr.mxu0 0.0
    %1873 = vmatpush1.msra.mxu0 0.0
    %1874 = vmatprep.subr.mxu0 0.0
    %1875 = vmatpush1.msra.mxu0 0.0
    %1876 = vmatprep.subr.mxu0 0.0
    %1877 = vmatpush1.msra.mxu0 0.0
    %1878 = vmatprep.subr.mxu0 0.0
    %1879 = vmatpush1.msra.mxu0 0.0
    %1880 = vmatprep.subr.mxu0 0.0
    %1881 = vmatpush1.msra.mxu0 0.0
    %1882 = vmatprep.subr.mxu0 0.0
    %1883 = vmatpush1.msra.mxu0 0.0
    %1884 = vmatprep.subr.mxu0 0.0
    %1885 = vmatpush1.msra.mxu0 0.0
    %1886 = vmatprep.mubr.f32.mxu0 0.0
    %1887 = vmatmul.mubr.f32.gmra.mrb[0].mxu0 %v1820
    %v1888 = vpop.f32.mrb[0].mxu0
    %v1889 = vadd.f32 0.0, %v1888
    %v1890 = vpop.f32.mrb[0].mxu0
    %1891 = vdwg.mxu0
    %v1892 = vadd.f32 %v1199, %v1889
    %v1893 = vxor.u32 %v1892, 2147483648
    %v1894 = vmul.f32 %v1893, 1.442695
    %v1895 = vpow.pop %v1894
    %v1896 = vadd.f32 %v1895, 1.0
    %v1897 = vrcp.pop %v1896
    %v1898 = vmul.f32 1.0, %v1897
    %v1899 = vtanh.pop %v1892
    %v1900 = vmul.f32 %v1898, %v1810
    %1902 = vrot.lane.b32.xlu0 %v1899, 64
    %v1903 = vpop.permute.xlu0 %1902
    %v1905 = vmul.f32 %v1898, %v1903
    %1907 = vrot.lane.b32.xlu0 %v1905, 32
    %v1908 = vpop.permute.xlu0 %1907
    %v1910 = vadd.f32 %v1900, %v1908
    %v1911 = vtanh.pop %v1910
    %1913 = vrot.lane.b32.xlu0 %v1911, 64
    %v1914 = vpop.permute.xlu0 %1913
    %v1916 = vmul.f32 %v1898, %v1914
    %1918 = vrot.lane.b32.xlu0 %v1916, 32
    %v1919 = vpop.permute.xlu0 %1918
    %v1920 = vsel %vm276, %v1919, 0
    %1922 = vmatprep.subr.mxu0 0.0
    %1923 = vmatpush1.msra.mxu0 %v1207
    %1924 = vmatprep.subr.mxu0 0.0
    %1925 = vmatpush1.msra.mxu0 %v1208
    %1926 = vmatprep.subr.mxu0 0.0
    %1927 = vmatpush1.msra.mxu0 %v1209
    %1928 = vmatprep.subr.mxu0 0.0
    %1929 = vmatpush1.msra.mxu0 %v1210
    %1930 = vmatprep.subr.mxu0 0.0
    %1931 = vmatpush1.msra.mxu0 0.0
    %1932 = vmatprep.subr.mxu0 0.0
    %1933 = vmatpush1.msra.mxu0 0.0
    %1934 = vmatprep.subr.mxu0 0.0
    %1935 = vmatpush1.msra.mxu0 0.0
    %1936 = vmatprep.subr.mxu0 0.0
    %1937 = vmatpush1.msra.mxu0 0.0
    %1938 = vmatprep.subr.mxu0 0.0
    %1939 = vmatpush1.msra.mxu0 0.0
    %1940 = vmatprep.subr.mxu0 0.0
    %1941 = vmatpush1.msra.mxu0 0.0
    %1942 = vmatprep.subr.mxu0 0.0
    %1943 = vmatpush1.msra.mxu0 0.0
    %1944 = vmatprep.subr.mxu0 0.0
    %1945 = vmatpush1.msra.mxu0 0.0
    %1946 = vmatprep.subr.mxu0 0.0
    %1947 = vmatpush1.msra.mxu0 0.0
    %1948 = vmatprep.subr.mxu0 0.0
    %1949 = vmatpush1.msra.mxu0 0.0
    %1950 = vmatprep.subr.mxu0 0.0
    %1951 = vmatpush1.msra.mxu0 0.0
    %1952 = vmatprep.subr.mxu0 0.0
    %1953 = vmatpush1.msra.mxu0 0.0
    %1954 = vmatprep.subr.mxu0 0.0
    %1955 = vmatpush1.msra.mxu0 0.0
    %1956 = vmatprep.subr.mxu0 0.0
    %1957 = vmatpush1.msra.mxu0 0.0
    %1958 = vmatprep.subr.mxu0 0.0
    %1959 = vmatpush1.msra.mxu0 0.0
    %1960 = vmatprep.subr.mxu0 0.0
    %1961 = vmatpush1.msra.mxu0 0.0
    %1962 = vmatprep.subr.mxu0 0.0
    %1963 = vmatpush1.msra.mxu0 0.0
    %1964 = vmatprep.subr.mxu0 0.0
    %1965 = vmatpush1.msra.mxu0 0.0
    %1966 = vmatprep.subr.mxu0 0.0
    %1967 = vmatpush1.msra.mxu0 0.0
    %1968 = vmatprep.subr.mxu0 0.0
    %1969 = vmatpush1.msra.mxu0 0.0
    %1970 = vmatprep.subr.mxu0 0.0
    %1971 = vmatpush1.msra.mxu0 0.0
    %1972 = vmatprep.subr.mxu0 0.0
    %1973 = vmatpush1.msra.mxu0 0.0
    %1974 = vmatprep.subr.mxu0 0.0
    %1975 = vmatpush1.msra.mxu0 0.0
    %1976 = vmatprep.subr.mxu0 0.0
    %1977 = vmatpush1.msra.mxu0 0.0
    %1978 = vmatprep.subr.mxu0 0.0
    %1979 = vmatpush1.msra.mxu0 0.0
    %1980 = vmatprep.subr.mxu0 0.0
    %1981 = vmatpush1.msra.mxu0 0.0
    %1982 = vmatprep.subr.mxu0 0.0
    %1983 = vmatpush1.msra.mxu0 0.0
    %1984 = vmatprep.subr.mxu0 0.0
    %1985 = vmatpush1.msra.mxu0 0.0
    %1986 = vmatprep.mubr.f32.mxu0 0.0
    %1987 = vmatmul.mubr.f32.gmra.mrb[0].mxu0 %v1920
    %v1988 = vpop.f32.mrb[0].mxu0
    %v1989 = vadd.f32 0.0, %v1988
    %v1990 = vpop.f32.mrb[0].mxu0
    %1991 = vdwg.mxu0
    %v1992 = vadd.f32 %v1204, %v1989
    %v1993 = vxor.u32 %v1992, 2147483648
    %v1994 = vmul.f32 %v1993, 1.442695
    %v1995 = vpow.pop %v1994
    %v1996 = vadd.f32 %v1995, 1.0
    %v1997 = vrcp.pop %v1996
    %v1998 = vmul.f32 1.0, %v1997
    %v1999 = vtanh.pop %v1992
    %v2000 = vmul.f32 %v1998, %v1910
    %2002 = vrot.lane.b32.xlu0 %v1999, 64
    %v2003 = vpop.permute.xlu0 %2002
    %v2005 = vmul.f32 %v1998, %v2003
    %2007 = vrot.lane.b32.xlu0 %v2005, 32
    %v2008 = vpop.permute.xlu0 %2007
    %v2010 = vadd.f32 %v2000, %v2008
    %v2011 = vtanh.pop %v2010
    %2013 = vrot.lane.b32.xlu0 %v2011, 64
    %v2014 = vpop.permute.xlu0 %2013
    %v2016 = vmul.f32 %v1998, %v2014
    %2018 = vrot.lane.b32.xlu0 %v2016, 32
    %v2019 = vpop.permute.xlu0 %2018
    %s2021 = scalar_lea.vmem [#allocation14], 8
    %2022 = vst.msk [vmem:[%s2021] sm:$0xff] %vm276, %v2019
    %2024 = vrot.lane.b32.xlu0 %v2010, 96
    %v2025 = vpop.permute.xlu0 %2024
    %s2027 = scalar_lea.vmem [#allocation16], 8
    %2028 = vst.msk [vmem:[%s2027] sm:$0xff] %vm276, %v2025
    %v2029 = vld [vmem:[%s9] sm:$0xff]
    %v2030 = vld [vmem:[%s9 + $0x8] sm:$0xff]
    %v2031 = vld [vmem:[%s9 + $0x10] sm:$0xff]
    %v2032 = vld [vmem:[%s9 + $0x18] sm:$0xff]
    %v2033 = vld [vmem:[#allocation11] sm:$0x1]
    %v2035 = vlaneseq
    %v2036 = vshrl.u32 %v2035, 7
    %v2037 = vsub.s32 0, %v2036
    %v2038 = vrot.slane %v2033, %v2037
    %v2040 = vsel %vm276, %v2019, 0
    %2042 = vmatprep.subr.mxu0 0.0
    %2043 = vmatpush1.msra.mxu0 %v2029
    %2044 = vmatprep.subr.mxu0 0.0
    %2045 = vmatpush1.msra.mxu0 %v2030
    %2046 = vmatprep.subr.mxu0 0.0
    %2047 = vmatpush1.msra.mxu0 %v2031
    %2048 = vmatprep.subr.mxu0 0.0
    %2049 = vmatpush1.msra.mxu0 %v2032
    %2050 = vmatprep.subr.mxu0 0.0
    %2051 = vmatpush1.msra.mxu0 0.0
    %2052 = vmatprep.subr.mxu0 0.0
    %2053 = vmatpush1.msra.mxu0 0.0
    %2054 = vmatprep.subr.mxu0 0.0
    %2055 = vmatpush1.msra.mxu0 0.0
    %2056 = vmatprep.subr.mxu0 0.0
    %2057 = vmatpush1.msra.mxu0 0.0
    %2058 = vmatprep.subr.mxu0 0.0
    %2059 = vmatpush1.msra.mxu0 0.0
    %2060 = vmatprep.subr.mxu0 0.0
    %2061 = vmatpush1.msra.mxu0 0.0
    %2062 = vmatprep.subr.mxu0 0.0
    %2063 = vmatpush1.msra.mxu0 0.0
    %2064 = vmatprep.subr.mxu0 0.0
    %2065 = vmatpush1.msra.mxu0 0.0
    %2066 = vmatprep.subr.mxu0 0.0
    %2067 = vmatpush1.msra.mxu0 0.0
    %2068 = vmatprep.subr.mxu0 0.0
    %2069 = vmatpush1.msra.mxu0 0.0
    %2070 = vmatprep.subr.mxu0 0.0
    %2071 = vmatpush1.msra.mxu0 0.0
    %2072 = vmatprep.subr.mxu0 0.0
    %2073 = vmatpush1.msra.mxu0 0.0
    %2074 = vmatprep.subr.mxu0 0.0
    %2075 = vmatpush1.msra.mxu0 0.0
    %2076 = vmatprep.subr.mxu0 0.0
    %2077 = vmatpush1.msra.mxu0 0.0
    %2078 = vmatprep.subr.mxu0 0.0
    %2079 = vmatpush1.msra.mxu0 0.0
    %2080 = vmatprep.subr.mxu0 0.0
    %2081 = vmatpush1.msra.mxu0 0.0
    %2082 = vmatprep.subr.mxu0 0.0
    %2083 = vmatpush1.msra.mxu0 0.0
    %2084 = vmatprep.subr.mxu0 0.0
    %2085 = vmatpush1.msra.mxu0 0.0
    %2086 = vmatprep.subr.mxu0 0.0
    %2087 = vmatpush1.msra.mxu0 0.0
    %2088 = vmatprep.subr.mxu0 0.0
    %2089 = vmatpush1.msra.mxu0 0.0
    %2090 = vmatprep.subr.mxu0 0.0
    %2091 = vmatpush1.msra.mxu0 0.0
    %2092 = vmatprep.subr.mxu0 0.0
    %2093 = vmatpush1.msra.mxu0 0.0
    %2094 = vmatprep.subr.mxu0 0.0
    %2095 = vmatpush1.msra.mxu0 0.0
    %2096 = vmatprep.subr.mxu0 0.0
    %2097 = vmatpush1.msra.mxu0 0.0
    %2098 = vmatprep.subr.mxu0 0.0
    %2099 = vmatpush1.msra.mxu0 0.0
    %2100 = vmatprep.subr.mxu0 0.0
    %2101 = vmatpush1.msra.mxu0 0.0
    %2102 = vmatprep.subr.mxu0 0.0
    %2103 = vmatpush1.msra.mxu0 0.0
    %2104 = vmatprep.subr.mxu0 0.0
    %2105 = vmatpush1.msra.mxu0 0.0
    %2106 = vmatprep.mubr.f32.mxu0 0.0
    %2107 = vmatmul.mubr.f32.gmra.mrb[0].mxu0 %v1320
    %v2108 = vpop.f32.mrb[0].mxu0
    %v2109 = vadd.f32 %v2038, %v2108
    %v2110 = vpop.f32.mrb[0].mxu0
    %2111 = vmatprep.mubr.f32.mxu0 0.0
    %2112 = vmatmul.mubr.f32.gmra.mrb[0].mxu0 %v1420
    %v2113 = vpop.f32.mrb[0].mxu0
    %v2114 = vadd.f32 %v2038, %v2113
    %v2115 = vpop.f32.mrb[0].mxu0
    %2116 = vmatprep.mubr.f32.mxu0 0.0
    %2117 = vmatmul.mubr.f32.gmra.mrb[0].mxu0 %v1520
    %v2118 = vpop.f32.mrb[0].mxu0
    %v2119 = vadd.f32 %v2038, %v2118
    %v2120 = vpop.f32.mrb[0].mxu0
    %2121 = vmatprep.mubr.f32.mxu0 0.0
    %2122 = vmatmul.mubr.f32.gmra.mrb[0].mxu0 %v1620
    %v2123 = vpop.f32.mrb[0].mxu0
    %v2124 = vadd.f32 %v2038, %v2123
    %v2125 = vpop.f32.mrb[0].mxu0
    %2126 = vmatprep.mubr.f32.mxu0 0.0
    %2127 = vmatmul.mubr.f32.gmra.mrb[0].mxu0 %v1720
    %v2128 = vpop.f32.mrb[0].mxu0
    %v2129 = vadd.f32 %v2038, %v2128
    %v2130 = vpop.f32.mrb[0].mxu0
    %2131 = vmatprep.mubr.f32.mxu0 0.0
    %2132 = vmatmul.mubr.f32.gmra.mrb[0].mxu0 %v1820
    %v2133 = vpop.f32.mrb[0].mxu0
    %v2134 = vadd.f32 %v2038, %v2133
    %v2135 = vpop.f32.mrb[0].mxu0
    %2136 = vmatprep.mubr.f32.mxu0 0.0
    %2137 = vmatmul.mubr.f32.gmra.mrb[0].mxu0 %v1920
    %v2138 = vpop.f32.mrb[0].mxu0
    %v2139 = vadd.f32 %v2038, %v2138
    %v2140 = vpop.f32.mrb[0].mxu0
    %2141 = vmatprep.mubr.f32.mxu0 0.0
    %2142 = vmatmul.mubr.f32.gmra.mrb[0].mxu0 %v2040
    %v2143 = vpop.f32.mrb[0].mxu0
    %v2144 = vadd.f32 %v2038, %v2143
    %v2145 = vpop.f32.mrb[0].mxu0
    %2146 = vdwg.mxu0
    %vm2147 = vcmask 89088
    %v2148 = vsel %vm2147, %v2109, -inf
    %2149 = vmax.xlane.f32.xlu0 %v2148
    %v2150 = vpop.xlane.xlu0 %2149
    %v2151 = vsel %vm2147, %v2114, -inf
    %2152 = vmax.xlane.f32.xlu0 %v2151
    %v2153 = vpop.xlane.xlu0 %2152
    %v2154 = vsel %vm2147, %v2119, -inf
    %2155 = vmax.xlane.f32.xlu0 %v2154
    %v2156 = vpop.xlane.xlu0 %2155
    %v2157 = vsel %vm2147, %v2124, -inf
    %2158 = vmax.xlane.f32.xlu0 %v2157
    %v2159 = vpop.xlane.xlu0 %2158
    %v2160 = vsel %vm2147, %v2129, -inf
    %2161 = vmax.xlane.f32.xlu0 %v2160
    %v2162 = vpop.xlane.xlu0 %2161
    %v2163 = vsel %vm2147, %v2134, -inf
    %2164 = vmax.xlane.f32.xlu0 %v2163
    %v2165 = vpop.xlane.xlu0 %2164
    %v2166 = vsel %vm2147, %v2139, -inf
    %2167 = vmax.xlane.f32.xlu0 %v2166
    %v2168 = vpop.xlane.xlu0 %2167
    %v2169 = vsel %vm2147, %v2144, -inf
    %2170 = vmax.xlane.f32.xlu0 %v2169
    %v2171 = vpop.xlane.xlu0 %2170
    %v2172 = vsub.f32 %v2109, %v2150
    %v2173 = vsub.f32 %v2114, %v2153
    %v2174 = vsub.f32 %v2119, %v2156
    %v2175 = vsub.f32 %v2124, %v2159
    %v2176 = vsub.f32 %v2129, %v2162
    %v2177 = vsub.f32 %v2134, %v2165
    %v2178 = vsub.f32 %v2139, %v2168
    %v2179 = vsub.f32 %v2144, %v2171
    %v2180 = vmul.f32 %v2172, 1.442695
    %v2181 = vpow.pop %v2180
    %v2182 = vmul.f32 %v2173, 1.442695
    %v2183 = vpow.pop %v2182
    %v2184 = vmul.f32 %v2174, 1.442695
    %v2185 = vpow.pop %v2184
    %v2186 = vmul.f32 %v2175, 1.442695
    %v2187 = vpow.pop %v2186
    %v2188 = vmul.f32 %v2176, 1.442695
    %v2189 = vpow.pop %v2188
    %v2190 = vmul.f32 %v2177, 1.442695
    %v2191 = vpow.pop %v2190
    %v2192 = vmul.f32 %v2178, 1.442695
    %v2193 = vpow.pop %v2192
    %v2194 = vmul.f32 %v2179, 1.442695
    %v2195 = vpow.pop %v2194
    %v2196 = vsel %vm2147, %v2181, 0.0
    %2197 = vadd.xlane.f32.xlu0 %v2196
    %v2198 = vpop.xlane.xlu0 %2197
    %v2199 = vsel %vm2147, %v2183, 0.0
    %2200 = vadd.xlane.f32.xlu0 %v2199
    %v2201 = vpop.xlane.xlu0 %2200
    %v2202 = vsel %vm2147, %v2185, 0.0
    %2203 = vadd.xlane.f32.xlu0 %v2202
    %v2204 = vpop.xlane.xlu0 %2203
    %v2205 = vsel %vm2147, %v2187, 0.0
    %2206 = vadd.xlane.f32.xlu0 %v2205
    %v2207 = vpop.xlane.xlu0 %2206
    %v2208 = vsel %vm2147, %v2189, 0.0
    %2209 = vadd.xlane.f32.xlu0 %v2208
    %v2210 = vpop.xlane.xlu0 %2209
    %v2211 = vsel %vm2147, %v2191, 0.0
    %2212 = vadd.xlane.f32.xlu0 %v2211
    %v2213 = vpop.xlane.xlu0 %2212
    %v2214 = vsel %vm2147, %v2193, 0.0
    %2215 = vadd.xlane.f32.xlu0 %v2214
    %v2216 = vpop.xlane.xlu0 %2215
    %v2217 = vsel %vm2147, %v2195, 0.0
    %2218 = vadd.xlane.f32.xlu0 %v2217
    %v2219 = vpop.xlane.xlu0 %2218
    %v2220 = vlog2.pop %v2198
    %v2221 = vmul.f32 %v2220, 0.6931472
    %v2222 = vlog2.pop %v2201
    %v2223 = vmul.f32 %v2222, 0.6931472
    %v2224 = vlog2.pop %v2204
    %v2225 = vmul.f32 %v2224, 0.6931472
    %v2226 = vlog2.pop %v2207
    %v2227 = vmul.f32 %v2226, 0.6931472
    %v2228 = vlog2.pop %v2210
    %v2229 = vmul.f32 %v2228, 0.6931472
    %v2230 = vlog2.pop %v2213
    %v2231 = vmul.f32 %v2230, 0.6931472
    %v2232 = vlog2.pop %v2216
    %v2233 = vmul.f32 %v2232, 0.6931472
    %v2234 = vlog2.pop %v2219
    %v2235 = vmul.f32 %v2234, 0.6931472
    %v2236 = vsub.f32 %v2172, %v2221
    %v2237 = vsub.f32 %v2173, %v2223
    %v2238 = vsub.f32 %v2174, %v2225
    %v2239 = vsub.f32 %v2175, %v2227
    %v2240 = vsub.f32 %v2176, %v2229
    %v2241 = vsub.f32 %v2177, %v2231
    %v2242 = vsub.f32 %v2178, %v2233
    %v2243 = vsub.f32 %v2179, %v2235
    %2244 = vst.msk [vmem:[#allocation13] sm:$0xff] %vm2147, %v2236
    %2245 = vst.msk [vmem:[#allocation13 + $0x8] sm:$0xff] %vm2147, %v2237
    %2246 = vst.msk [vmem:[#allocation13 + $0x10] sm:$0xff] %vm2147, %v2238
    %2247 = vst.msk [vmem:[#allocation13 + $0x18] sm:$0xff] %vm2147, %v2239
    %2248 = vst.msk [vmem:[#allocation13 + $0x20] sm:$0xff] %vm2147, %v2240
    %2249 = vst.msk [vmem:[#allocation13 + $0x28] sm:$0xff] %vm2147, %v2241
    %2250 = vst.msk [vmem:[#allocation13 + $0x30] sm:$0xff] %vm2147, %v2242
    %2251 = vst.msk [vmem:[#allocation13 + $0x38] sm:$0xff] %vm2147, %v2243
    // Predicated region
    $region70: #{stacked_lstm_forward.1} parent=1 // pred_check
      _
    $region71: #{stacked_lstm_forward.1} parent=1 // pred_check_branch
      %2253 = sbr.rel (0) target = $region73
    $region72: #{stacked_lstm_forward.1} parent=1 // pred_region
      %s2255 = ssub.s32 1024, 1024
      %2256 = vsyncadd [#allocation4], %s2255
      %s2257 = sshll.u32 [#allocation13], 4
      %s2258 = int_to_ptr.vmem [resolvable:$true] %s2257
      %2263 = dma.vmem_to_hbm [thread:$0]  %s2258, 1024, %s11, [#allocation4], 128, 128, 8
    $region73: #{stacked_lstm_forward.1} parent=1 // pred_fallthru
      _
    // Predicated region
    $region74: #{stacked_lstm_forward.1} parent=1 // pred_check
      _
    $region75: #{stacked_lstm_forward.1} parent=1 // pred_check_branch
      %2265 = sbr.rel (0) target = $region77
    $region76: #{stacked_lstm_forward.1} parent=1 // pred_region
      %s2267 = ssub.s32 256, 256
      %2268 = vsyncadd [#allocation15], %s2267
      %s2269 = sshll.u32 [#allocation14], 4
      %s2270 = int_to_ptr.vmem [resolvable:$true] %s2269
      %2275 = dma.vmem_to_hbm [thread:$0]  %s2270, 256, %s12, [#allocation15], 128, 128, 8
    $region77: #{stacked_lstm_forward.1} parent=1 // pred_fallthru
      _
    // Predicated region
    $region78: #{stacked_lstm_forward.1} parent=1 // pred_check
      _
    $region79: #{stacked_lstm_forward.1} parent=1 // pred_check_branch
      %2277 = sbr.rel (0) target = $region81
    $region80: #{stacked_lstm_forward.1} parent=1 // pred_region
      %s2279 = ssub.s32 256, 256
      %2280 = vsyncadd [#allocation15], %s2279
      %s2281 = sshll.u32 [#allocation16], 4
      %s2282 = int_to_ptr.vmem [resolvable:$true] %s2281
      %2287 = dma.vmem_to_hbm [thread:$0]  %s2282, 256, %s13, [#allocation15], 128, 128, 8
    $region81: #{stacked_lstm_forward.1} parent=1 // pred_fallthru
      _
    // Predicated region
    $region82: #{stacked_lstm_forward.1} parent=1 // pred_check
      _
    $region83: #{stacked_lstm_forward.1} parent=1 // pred_check_branch
      %2289 = sbr.rel (0) target = $region85
    $region84: #{stacked_lstm_forward.1} parent=1 // pred_region
      %2290 = dma.done [#allocation4], 1024
    $region85: #{stacked_lstm_forward.1} parent=1 // pred_fallthru
      _
    // Predicated region
    $region86: #{stacked_lstm_forward.1} parent=1 // pred_check
      _
    $region87: #{stacked_lstm_forward.1} parent=1 // pred_check_branch
      %2292 = sbr.rel (0) target = $region89
    $region88: #{stacked_lstm_forward.1} parent=1 // pred_region
      %2293 = dma.done [#allocation15], 256
    $region89: #{stacked_lstm_forward.1} parent=1 // pred_fallthru
      _
    // Predicated region
    $region90: #{stacked_lstm_forward.1} parent=1 // pred_check
      _
    $region91: #{stacked_lstm_forward.1} parent=1 // pred_check_branch
      %2295 = sbr.rel (0) target = $region93
    $region92: #{stacked_lstm_forward.1} parent=1 // pred_region
      %2296 = dma.done [#allocation15], 256
    $region93: #{stacked_lstm_forward.1} parent=1 // pred_fallthru
      _
    %2297 = vsyncpa [#allocation3], 1
    %2298 = vsyncpa [#allocation6], 1
    %2299 = vsyncpa [#allocation9], 1
    %2300 = vsyncpa [#allocation12], 1
    %2301 = vsyncpa [#allocation4], 1
    %2302 = vsyncpa [#allocation15], 1

</llo_original>
